<compile_context>
chip_gen: v7x
topology: tpu7x:2x2x1
jax: 0.10.0
libtpu: 0.0.40
codegen_flags: <defaults>
</compile_context>

<pallas_src>
import functools

import jax
import jax.numpy as jnp
from jax.experimental import pallas as pl
from jax.experimental.pallas import tpu as pltpu

IN_FEATURES = 28 * 28      # 784 (used as-is: no K padding)
HIDDEN = 512
OUT_FEATURES = 10
OUT_PAD = 128              # lane-dense padded output


def _round_up(n, m):
    return ((n + m - 1) // m) * m


def mlp_kernel(x_ref, w1_ref, b1_ref, w2_ref, b2_ref, w3_ref, b3_ref, o_ref):
    """Fused 3-layer MLP tile: Linear+ReLU -> Linear+ReLU -> Linear (padded out)."""
    x = x_ref[...]                                                         # bf16 (TB, 784)
    h1 = jnp.dot(x, w1_ref[...], preferred_element_type=jnp.float32)      # f32 acc
    h1 = jnp.maximum(h1 + b1_ref[...], 0.0).astype(jnp.bfloat16)
    h2 = jnp.dot(h1, w2_ref[...], preferred_element_type=jnp.float32)
    h2 = jnp.maximum(h2 + b2_ref[...], 0.0).astype(jnp.bfloat16)
    o_ref[...] = jnp.dot(h2, w3_ref[...], preferred_element_type=jnp.float32) + b3_ref[...]


def prepare_params(params):
    """One-time (outside the hot path): transpose to (in, out), cast bf16, pad out dim."""
    w1, b1, w2, b2, w3, b3 = params
    w1p = w1.T.astype(jnp.bfloat16)                                  # (784, 512)
    w2p = w2.T.astype(jnp.bfloat16)                                  # (512, 512)
    w3t = w3.T.astype(jnp.bfloat16)                                  # (512, 10)
    w3p = jnp.pad(w3t, ((0, 0), (0, OUT_PAD - w3t.shape[1])))        # (512, 128)
    b1p = b1.reshape(1, -1).astype(jnp.float32)                      # (1, 512)
    b2p = b2.reshape(1, -1).astype(jnp.float32)                      # (1, 512)
    b3p = jnp.pad(b3.reshape(1, -1).astype(jnp.float32),
                  ((0, 0), (0, OUT_PAD - b3.shape[0])))              # (1, 128)
    return w1p, b1p, w2p, b2p, w3p, b3p


def _pick_batch_tile(B, block_b):
    """Batch tile: small for tiny B, big for throughput, >=2 steps for v7x's 2 TCs."""
    if B < 128:
        return _round_up(B, 16)          # bf16 sublane min (16) / f32 out min (8)
    tb = min(block_b, _round_up(B, 128))
    if B >= 256 and _round_up(B, tb) == tb:
        # Whole batch fits a single grid step -> halve so the "parallel" batch
        # axis exposes at least 2 steps (v7x 2-TensorCore sharding).
        tb = _round_up(tb // 2, 128)
    return tb


@functools.partial(jax.jit, static_argnames=("block_b",))
def neural_network_forward(x, prepared, block_b=512):
    """Equivalent of NeuralNetwork.forward: flatten + linear_relu_stack."""
    w1p, b1p, w2p, b2p, w3p, b3p = prepared
    B = x.shape[0]

    xf = x.reshape(B, -1).astype(jnp.bfloat16)                        # (B, 784), no K pad

    tb = _pick_batch_tile(B, block_b)
    padded_B = _round_up(B, tb)
    if padded_B != B:
        xf = jnp.pad(xf, ((0, padded_B - B), (0, 0)))

    out = pl.pallas_call(
        mlp_kernel,
        out_shape=jax.ShapeDtypeStruct((padded_B, OUT_PAD), jnp.float32),
        grid=(padded_B // tb,),
        in_specs=[
            pl.BlockSpec((tb, IN_FEATURES), lambda i: (i, 0)),         # x: batch-tiled, K=784
            pl.BlockSpec((IN_FEATURES, HIDDEN), lambda i: (0, 0)),     # w1: resident
            pl.BlockSpec((1, HIDDEN), lambda i: (0, 0)),               # b1: resident
            pl.BlockSpec((HIDDEN, HIDDEN), lambda i: (0, 0)),          # w2: resident
            pl.BlockSpec((1, HIDDEN), lambda i: (0, 0)),               # b2: resident
            pl.BlockSpec((HIDDEN, OUT_PAD), lambda i: (0, 0)),         # w3: resident
            pl.BlockSpec((1, OUT_PAD), lambda i: (0, 0)),              # b3: resident
        ],
        out_specs=pl.BlockSpec((tb, OUT_PAD), lambda i: (i, 0)),
        compiler_params=pltpu.CompilerParams(
            dimension_semantics=("parallel",),
            vmem_limit_bytes=64 * 1024 * 1024,   # don't let the 16/32 MiB scoped default bind
        ),
    )(xf, w1p, b1p, w2p, b2p, w3p, b3p)

    return out[:B, :OUT_FEATURES]


def init_linear(key, in_features, out_features):
    """Deterministic init matching torch.nn.Linear default (uniform +-1/sqrt(in))."""
    kw, kb = jax.random.split(key)
    bound = 1.0 / (in_features ** 0.5)
    w = jax.random.uniform(kw, (out_features, in_features), jnp.float32, -bound, bound)
    b = jax.random.uniform(kb, (out_features,), jnp.float32, -bound, bound)
    return w, b


def _ref_bf16(x, params):
    """Precision-matched pure-JAX reference (bf16 operands, f32 accumulation)."""
    w1, b1, w2, b2, w3, b3 = params
    xf = x.reshape(x.shape[0], -1).astype(jnp.bfloat16)
    h1 = jnp.maximum(
        jnp.dot(xf, w1.T.astype(jnp.bfloat16), preferred_element_type=jnp.float32) + b1, 0.0
    ).astype(jnp.bfloat16)
    h2 = jnp.maximum(
        jnp.dot(h1, w2.T.astype(jnp.bfloat16), preferred_element_type=jnp.float32) + b2, 0.0
    ).astype(jnp.bfloat16)
    return jnp.dot(h2, w3.T.astype(jnp.bfloat16), preferred_element_type=jnp.float32) + b3


if __name__ == "__main__":
    key = jax.random.PRNGKey(0)
    k_x, k1, k2, k3 = jax.random.split(key, 4)

    w1, b1 = init_linear(k1, IN_FEATURES, HIDDEN)
    w2, b2 = init_linear(k2, HIDDEN, HIDDEN)
    w3, b3 = init_linear(k3, IN_FEATURES and HIDDEN, OUT_FEATURES)  # (512 -> 10)
    params = (w1, b1, w2, b2, w3, b3)
    prepared = prepare_params(params)  # one-time weight prep, outside the hot path

    # --- small-batch inference path (B=4, tb=16) ---
    B = 4
    x = jax.random.uniform(k_x, (B, 28, 28), jnp.float32)
    logits = neural_network_forward(x, prepared)
    logits = jax.block_until_ready(logits)
    assert logits.shape == (B, OUT_FEATURES)

    ref = _ref_bf16(x, params)
    assert jnp.allclose(logits, ref, atol=2e-3, rtol=2e-2)

    # Loose sanity check against the full-f32 reference (bf16 rounding allowance).
    r = jnp.maximum(x.reshape(B, -1) @ w1.T + b1, 0.0)
    r = jnp.maximum(r @ w2.T + b2, 0.0)
    ref_f32 = r @ w3.T + b3
    assert jnp.allclose(logits, ref_f32, atol=1e-1, rtol=1e-1)

    # --- padded/tiled batch path (B=192 -> tb=256, batch padded to 256) ---
    B2 = 192
    x2 = jax.random.uniform(jax.random.PRNGKey(1), (B2, 28, 28), jnp.float32)
    logits2 = jax.block_until_ready(neural_network_forward(x2, prepared))
    assert logits2.shape == (B2, OUT_FEATURES)
    assert jnp.allclose(logits2, _ref_bf16(x2, params), atol=2e-3, rtol=2e-2)

    print("KERNEL_OK")
</pallas_src>

<mosaic_0001>
module attributes {stable_mosaic.version = 11 : i64} {
  func.func @mlp_kernel(%arg0: i32, %arg1: memref<16x784xbf16, #tpu.memory_space<vmem>>, %arg2: memref<784x512xbf16, #tpu.memory_space<vmem>>, %arg3: memref<1x512xf32, #tpu.memory_space<vmem>>, %arg4: memref<512x512xbf16, #tpu.memory_space<vmem>>, %arg5: memref<1x512xf32, #tpu.memory_space<vmem>>, %arg6: memref<512x128xbf16, #tpu.memory_space<vmem>>, %arg7: memref<1x128xf32, #tpu.memory_space<vmem>>, %arg8: memref<16x128xf32, #tpu.memory_space<vmem>>) attributes {dimension_semantics = [#tpu.dimension_semantics<parallel>], iteration_bounds = array<i64: 1>, scalar_prefetch = 0 : i64, scratch_operands = 0 : i64, tpu.core_type = #tpu.core_type<tc>, window_params = [{transform_indices = @transform_0, window_bounds = array<i64: 16, 784>}, {pipeline_mode = #tpu.pipeline_mode<synchronous>, transform_indices = @transform_1, window_bounds = array<i64: 784, 512>}, {pipeline_mode = #tpu.pipeline_mode<synchronous>, transform_indices = @transform_2, window_bounds = array<i64: 1, 512>}, {pipeline_mode = #tpu.pipeline_mode<synchronous>, transform_indices = @transform_3, window_bounds = array<i64: 512, 512>}, {pipeline_mode = #tpu.pipeline_mode<synchronous>, transform_indices = @transform_4, window_bounds = array<i64: 1, 512>}, {pipeline_mode = #tpu.pipeline_mode<synchronous>, transform_indices = @transform_5, window_bounds = array<i64: 512, 128>}, {pipeline_mode = #tpu.pipeline_mode<synchronous>, transform_indices = @transform_6, window_bounds = array<i64: 1, 128>}, {transform_indices = @transform_7, window_bounds = array<i64: 16, 128>}]} {
    %c0 = arith.constant 0 : index
    %c0_0 = arith.constant 0 : index
    %0 = vector.load %arg1[%c0, %c0_0] : memref<16x784xbf16, #tpu.memory_space<vmem>>, vector<16x784xbf16>
    %c0_1 = arith.constant 0 : index
    %c0_2 = arith.constant 0 : index
    %1 = vector.load %arg2[%c0_1, %c0_2] : memref<784x512xbf16, #tpu.memory_space<vmem>>, vector<784x512xbf16>
    %cst = arith.constant dense<0.000000e+00> : vector<16x512xf32>
    %2 = tpu.matmul %0, %1, %cst {dimension_numbers = #tpu.dot_dimension_numbers<[1], [0], [0], [1], [0, 0, 1, 1], [], []>} : vector<16x784xbf16>, vector<784x512xbf16>, vector<16x512xf32> -> vector<16x512xf32>
    %c0_3 = arith.constant 0 : index
    %c0_4 = arith.constant 0 : index
    %3 = vector.load %arg3[%c0_3, %c0_4] : memref<1x512xf32, #tpu.memory_space<vmem>>, vector<1x512xf32>
    %4 = vector.broadcast %3 : vector<1x512xf32> to vector<16x512xf32>
    %5 = arith.addf %2, %4 : vector<16x512xf32>
    %cst_5 = arith.constant 0.000000e+00 : f32
    %6 = vector.broadcast %cst_5 : f32 to vector<16x512xf32>
    %7 = arith.maximumf %5, %6 : vector<16x512xf32>
    %8 = arith.truncf %7 : vector<16x512xf32> to vector<16x512xbf16>
    %c0_6 = arith.constant 0 : index
    %c0_7 = arith.constant 0 : index
    %9 = vector.load %arg4[%c0_6, %c0_7] : memref<512x512xbf16, #tpu.memory_space<vmem>>, vector<512x512xbf16>
    %cst_8 = arith.constant dense<0.000000e+00> : vector<16x512xf32>
    %10 = tpu.matmul %8, %9, %cst_8 {dimension_numbers = #tpu.dot_dimension_numbers<[1], [0], [0], [1], [0, 0, 1, 1], [], []>} : vector<16x512xbf16>, vector<512x512xbf16>, vector<16x512xf32> -> vector<16x512xf32>
    %c0_9 = arith.constant 0 : index
    %c0_10 = arith.constant 0 : index
    %11 = vector.load %arg5[%c0_9, %c0_10] : memref<1x512xf32, #tpu.memory_space<vmem>>, vector<1x512xf32>
    %12 = vector.broadcast %11 : vector<1x512xf32> to vector<16x512xf32>
    %13 = arith.addf %10, %12 : vector<16x512xf32>
    %cst_11 = arith.constant 0.000000e+00 : f32
    %14 = vector.broadcast %cst_11 : f32 to vector<16x512xf32>
    %15 = arith.maximumf %13, %14 : vector<16x512xf32>
    %16 = arith.truncf %15 : vector<16x512xf32> to vector<16x512xbf16>
    %c0_12 = arith.constant 0 : index
    %c0_13 = arith.constant 0 : index
    %17 = vector.load %arg6[%c0_12, %c0_13] : memref<512x128xbf16, #tpu.memory_space<vmem>>, vector<512x128xbf16>
    %cst_14 = arith.constant dense<0.000000e+00> : vector<16x128xf32>
    %18 = tpu.matmul %16, %17, %cst_14 {dimension_numbers = #tpu.dot_dimension_numbers<[1], [0], [0], [1], [0, 0, 1, 1], [], []>} : vector<16x512xbf16>, vector<512x128xbf16>, vector<16x128xf32> -> vector<16x128xf32>
    %c0_15 = arith.constant 0 : index
    %c0_16 = arith.constant 0 : index
    %19 = vector.load %arg7[%c0_15, %c0_16] : memref<1x128xf32, #tpu.memory_space<vmem>>, vector<1x128xf32>
    %20 = vector.broadcast %19 : vector<1x128xf32> to vector<16x128xf32>
    %21 = arith.addf %18, %20 : vector<16x128xf32>
    %c0_17 = arith.constant 0 : index
    %c0_18 = arith.constant 0 : index
    %22 = vector.load %arg8[%c0_17, %c0_18] : memref<16x128xf32, #tpu.memory_space<vmem>>, vector<16x128xf32>
    tpu.vector_store %arg8[%c0_17, %c0_18], %21 {strides = array<i32>} : memref<16x128xf32, #tpu.memory_space<vmem>>, vector<16x128xf32>,
    return
  }
  func.func @transform_0(%arg0: i32) -> (i32, i32) {
    %c0_i32 = arith.constant 0 : i32
    %c0_i32_0 = arith.constant 0 : i32
    return %arg0, %c0_i32 : i32, i32
  }
  func.func @transform_1(%arg0: i32) -> (i32, i32) {
    %c0_i32 = arith.constant 0 : i32
    %c0_i32_0 = arith.constant 0 : i32
    %c0_i32_1 = arith.constant 0 : i32
    return %c0_i32, %c0_i32_0 : i32, i32
  }
  func.func @transform_2(%arg0: i32) -> (i32, i32) {
    %c0_i32 = arith.constant 0 : i32
    %c0_i32_0 = arith.constant 0 : i32
    %c0_i32_1 = arith.constant 0 : i32
    return %c0_i32, %c0_i32_0 : i32, i32
  }
  func.func @transform_3(%arg0: i32) -> (i32, i32) {
    %c0_i32 = arith.constant 0 : i32
    %c0_i32_0 = arith.constant 0 : i32
    %c0_i32_1 = arith.constant 0 : i32
    return %c0_i32, %c0_i32_0 : i32, i32
  }
  func.func @transform_4(%arg0: i32) -> (i32, i32) {
    %c0_i32 = arith.constant 0 : i32
    %c0_i32_0 = arith.constant 0 : i32
    %c0_i32_1 = arith.constant 0 : i32
    return %c0_i32, %c0_i32_0 : i32, i32
  }
  func.func @transform_5(%arg0: i32) -> (i32, i32) {
    %c0_i32 = arith.constant 0 : i32
    %c0_i32_0 = arith.constant 0 : i32
    %c0_i32_1 = arith.constant 0 : i32
    return %c0_i32, %c0_i32_0 : i32, i32
  }
  func.func @transform_6(%arg0: i32) -> (i32, i32) {
    %c0_i32 = arith.constant 0 : i32
    %c0_i32_0 = arith.constant 0 : i32
    %c0_i32_1 = arith.constant 0 : i32
    return %c0_i32, %c0_i32_0 : i32, i32
  }
  func.func @transform_7(%arg0: i32) -> (i32, i32) {
    %c0_i32 = arith.constant 0 : i32
    %c0_i32_0 = arith.constant 0 : i32
    return %arg0, %c0_i32 : i32, i32
  }
}

</mosaic_0001>

<llo_original>
// kernel: neural_network_forward.1
$region0: #{neural_network_forward.1}
  #allocation0 [shape = 'u32[]', space=smem, size = 0x4, offset = 0x4, fixed_abs, tag = 'smem constant byte address 0x4 - core index']
  #allocation1 [shape = 'u32[144,128]{1,0:T(1,128)}', space=vmem, size = 0x12000, scoped, tag = 'internal scratch']
  %s0 = inlined_call_operand.hbm [shape: bf16[16,784], index: 0, kind: input, shape index: {}]
  %s1 = inlined_call_operand.hbm [shape: bf16[784,512], index: 1, kind: input, shape index: {}]
  %s2 = inlined_call_operand.hbm [shape: f32[1,512], index: 2, kind: input, shape index: {}]
  %s3 = inlined_call_operand.hbm [shape: bf16[512,512], index: 3, kind: input, shape index: {}]
  %s4 = inlined_call_operand.hbm [shape: f32[1,512], index: 4, kind: input, shape index: {}]
  %s5 = inlined_call_operand.hbm [shape: bf16[512,128], index: 5, kind: input, shape index: {}]
  %s6 = inlined_call_operand.hbm [shape: f32[1,128], index: 6, kind: input, shape index: {}]
  %s7 = inlined_call_operand.hbm [shape: f32[16,128], index: 7, kind: output, shape index: {}]
  %s8 = sld [smem:[#allocation0]]
  $region66: #{neural_network_forward.1} parent=0
    _
  %s10 = ssub.s32 1, %s8
  %s11 = scalar_select 0, %s10, %s8
  $region1: #{neural_network_forward.1} parent=0
    #allocation2 [shape = 'u8[28672]{0}', space=vmem, size = 0x7000, scoped, tag = 'input window, operand 0, single buffered']
    #allocation3 [shape = 's32[1]{0}', space=sflag, size = 0x4, scoped, tag = 'scoped memory for neural_network_forward.1']
    #allocation4 [shape = 's32[1]{0}', space=sflag, size = 0x4, scoped, tag = 'scoped memory for neural_network_forward.1']
    #allocation5 [shape = 'u8[802816]{0}', space=vmem, size = 0xc4000, scoped, tag = 'input window, operand 1, single buffered']
    #allocation6 [shape = 's32[1]{0}', space=sflag, size = 0x4, scoped, tag = 'scoped memory for neural_network_forward.1']
    #allocation7 [shape = 'u8[2048]{0}', space=vmem, size = 0x800, scoped, tag = 'input window, operand 2, single buffered']
    #allocation8 [shape = 'u8[524288]{0}', space=vmem, size = 0x80000, scoped, tag = 'input window, operand 3, single buffered']
    #allocation9 [shape = 's32[1]{0}', space=sflag, size = 0x4, scoped, tag = 'scoped memory for neural_network_forward.1']
    #allocation10 [shape = 'u8[2048]{0}', space=vmem, size = 0x800, scoped, tag = 'input window, operand 4, single buffered']
    #allocation11 [shape = 'u8[131072]{0}', space=vmem, size = 0x20000, scoped, tag = 'input window, operand 5, single buffered']
    #allocation12 [shape = 's32[1]{0}', space=sflag, size = 0x4, scoped, tag = 'scoped memory for neural_network_forward.1']
    #allocation13 [shape = 'u8[512]{0}', space=vmem, size = 0x400, scoped, tag = 'input window, operand 6, single buffered']
    #allocation14 [shape = 'u8[8192]{0}', space=vmem, size = 0x2000, scoped, tag = 'output window, operand 0, single buffered']
    %12 = vsyncpa [#allocation3], 0
    %13 = vsyncpa [#allocation6], 0
    %14 = vsyncpa [#allocation9], 0
    %15 = vsyncpa [#allocation12], 0
    %16 = vsyncpa [#allocation4], 0
    // Predicated region
    $region2: #{neural_network_forward.1} parent=1 // pred_check
      _
    $region3: #{neural_network_forward.1} parent=1 // pred_check_branch
      %18 = sbr.rel (0) target = $region5
    $region4: #{neural_network_forward.1} parent=1 // pred_region
      %s20 = ssub.s32 896, 896
      %21 = vsyncadd [#allocation3], %s20
      %s22 = sshll.u32 [#allocation2], 4
      %s23 = int_to_ptr.vmem [resolvable:$true] %s22
      %28 = dma.hbm_to_vmem [thread:$0]  %s0, 896, %s23, [#allocation3], 448, 448, 28
    $region5: #{neural_network_forward.1} parent=1 // pred_fallthru
      _
    // Predicated region
    $region6: #{neural_network_forward.1} parent=1 // pred_check
      _
    $region7: #{neural_network_forward.1} parent=1 // pred_check_branch
      %30 = sbr.rel (0) target = $region9
    $region8: #{neural_network_forward.1} parent=1 // pred_region
      %s32 = ssub.s32 25088, 25088
      %33 = vsyncadd [#allocation6], %s32
      %s34 = sshll.u32 [#allocation5], 4
      %s35 = int_to_ptr.vmem [resolvable:$true] %s34
      %40 = dma.hbm_to_vmem [thread:$0]  %s1, 25088, %s35, [#allocation6], 256, 256, 16
    $region9: #{neural_network_forward.1} parent=1 // pred_fallthru
      _
    // Predicated region
    $region10: #{neural_network_forward.1} parent=1 // pred_check
      _
    $region11: #{neural_network_forward.1} parent=1 // pred_check_branch
      %42 = sbr.rel (0) target = $region13
    $region12: #{neural_network_forward.1} parent=1 // pred_region
      %s44 = ssub.s32 64, 64
      %45 = vsyncadd [#allocation6], %s44
      %s47 = sshll.u32 [#allocation7], 4
      %s48 = int_to_ptr.vmem [resolvable:$true] %s47
      %50 = dma.hbm_to_vmem [thread:$0]  %s2, 64, %s48, [#allocation6]
    $region13: #{neural_network_forward.1} parent=1 // pred_fallthru
      _
    // Predicated region
    $region14: #{neural_network_forward.1} parent=1 // pred_check
      _
    $region15: #{neural_network_forward.1} parent=1 // pred_check_branch
      %52 = sbr.rel (0) target = $region17
    $region16: #{neural_network_forward.1} parent=1 // pred_region
      %s54 = ssub.s32 16384, 16384
      %55 = vsyncadd [#allocation9], %s54
      %s56 = sshll.u32 [#allocation8], 4
      %s57 = int_to_ptr.vmem [resolvable:$true] %s56
      %62 = dma.hbm_to_vmem [thread:$0]  %s3, 16384, %s57, [#allocation9], 256, 256, 16
    $region17: #{neural_network_forward.1} parent=1 // pred_fallthru
      _
    // Predicated region
    $region18: #{neural_network_forward.1} parent=1 // pred_check
      _
    $region19: #{neural_network_forward.1} parent=1 // pred_check_branch
      %64 = sbr.rel (0) target = $region21
    $region20: #{neural_network_forward.1} parent=1 // pred_region
      %s66 = ssub.s32 64, 64
      %67 = vsyncadd [#allocation9], %s66
      %s69 = sshll.u32 [#allocation10], 4
      %s70 = int_to_ptr.vmem [resolvable:$true] %s69
      %72 = dma.hbm_to_vmem [thread:$0]  %s4, 64, %s70, [#allocation9]
    $region21: #{neural_network_forward.1} parent=1 // pred_fallthru
      _
    // Predicated region
    $region22: #{neural_network_forward.1} parent=1 // pred_check
      _
    $region23: #{neural_network_forward.1} parent=1 // pred_check_branch
      %74 = sbr.rel (0) target = $region25
    $region24: #{neural_network_forward.1} parent=1 // pred_region
      %s76 = ssub.s32 4096, 4096
      %77 = vsyncadd [#allocation12], %s76
      %s78 = sshll.u32 [#allocation11], 4
      %s79 = int_to_ptr.vmem [resolvable:$true] %s78
      %84 = dma.hbm_to_vmem [thread:$0]  %s5, 4096, %s79, [#allocation12], 64, 64, 4
    $region25: #{neural_network_forward.1} parent=1 // pred_fallthru
      _
    // Predicated region
    $region26: #{neural_network_forward.1} parent=1 // pred_check
      _
    $region27: #{neural_network_forward.1} parent=1 // pred_check_branch
      %86 = sbr.rel (0) target = $region29
    $region28: #{neural_network_forward.1} parent=1 // pred_region
      %s88 = ssub.s32 16, 16
      %89 = vsyncadd [#allocation12], %s88
      %s91 = sshll.u32 [#allocation13], 4
      %s92 = int_to_ptr.vmem [resolvable:$true] %s91
      %94 = dma.hbm_to_vmem [thread:$0]  %s6, 16, %s92, [#allocation12]
    $region29: #{neural_network_forward.1} parent=1 // pred_fallthru
      _
    // Predicated region
    $region30: #{neural_network_forward.1} parent=1 // pred_check
      _
    $region31: #{neural_network_forward.1} parent=1 // pred_check_branch
      %96 = sbr.rel (0) target = $region33
    $region32: #{neural_network_forward.1} parent=1 // pred_region
      %97 = dma.done [#allocation3], 896
    $region33: #{neural_network_forward.1} parent=1 // pred_fallthru
      _
    // Predicated region
    $region34: #{neural_network_forward.1} parent=1 // pred_check
      _
    $region35: #{neural_network_forward.1} parent=1 // pred_check_branch
      %99 = sbr.rel (0) target = $region37
    $region36: #{neural_network_forward.1} parent=1 // pred_region
      %100 = dma.done [#allocation6], 25088
    $region37: #{neural_network_forward.1} parent=1 // pred_fallthru
      _
    // Predicated region
    $region38: #{neural_network_forward.1} parent=1 // pred_check
      _
    $region39: #{neural_network_forward.1} parent=1 // pred_check_branch
      %102 = sbr.rel (0) target = $region41
    $region40: #{neural_network_forward.1} parent=1 // pred_region
      %103 = dma.done [#allocation6], 64
    $region41: #{neural_network_forward.1} parent=1 // pred_fallthru
      _
    // Predicated region
    $region42: #{neural_network_forward.1} parent=1 // pred_check
      _
    $region43: #{neural_network_forward.1} parent=1 // pred_check_branch
      %105 = sbr.rel (0) target = $region45
    $region44: #{neural_network_forward.1} parent=1 // pred_region
      %106 = dma.done [#allocation9], 16384
    $region45: #{neural_network_forward.1} parent=1 // pred_fallthru
      _
    // Predicated region
    $region46: #{neural_network_forward.1} parent=1 // pred_check
      _
    $region47: #{neural_network_forward.1} parent=1 // pred_check_branch
      %108 = sbr.rel (0) target = $region49
    $region48: #{neural_network_forward.1} parent=1 // pred_region
      %109 = dma.done [#allocation9], 64
    $region49: #{neural_network_forward.1} parent=1 // pred_fallthru
      _
    // Predicated region
    $region50: #{neural_network_forward.1} parent=1 // pred_check
      _
    $region51: #{neural_network_forward.1} parent=1 // pred_check_branch
      %111 = sbr.rel (0) target = $region53
    $region52: #{neural_network_forward.1} parent=1 // pred_region
      %112 = dma.done [#allocation12], 4096
    $region53: #{neural_network_forward.1} parent=1 // pred_fallthru
      _
    // Predicated region
    $region54: #{neural_network_forward.1} parent=1 // pred_check
      _
    $region55: #{neural_network_forward.1} parent=1 // pred_check_branch
      %114 = sbr.rel (0) target = $region57
    $region56: #{neural_network_forward.1} parent=1 // pred_region
      %115 = dma.done [#allocation12], 16
    $region57: #{neural_network_forward.1} parent=1 // pred_fallthru
      _
    %v117 = vld [vmem:[#allocation2] sm:$0xff]
    %v118 = vld [vmem:[#allocation2 + $0x8] sm:$0xff]
    %v119 = vld [vmem:[#allocation2 + $0x10] sm:$0xff]
    %v120 = vld [vmem:[#allocation2 + $0x18] sm:$0xf]
    %v121 = vld [vmem:[#allocation2 + $0x1c] sm:$0xff]
    %v122 = vld [vmem:[#allocation2 + $0x24] sm:$0xff]
    %v123 = vld [vmem:[#allocation2 + $0x2c] sm:$0xff]
    %v124 = vld [vmem:[#allocation2 + $0x34] sm:$0xf]
    %v125 = vld [vmem:[#allocation5] sm:$0xff]
    %v126 = vld [vmem:[#allocation5 + $0x8] sm:$0xff]
    %v127 = vld [vmem:[#allocation5 + $0x10] sm:$0xff]
    %v128 = vld [vmem:[#allocation5 + $0x18] sm:$0xff]
    %v129 = vld [vmem:[#allocation5 + $0x20] sm:$0xff]
    %v130 = vld [vmem:[#allocation5 + $0x28] sm:$0xff]
    %v131 = vld [vmem:[#allocation5 + $0x30] sm:$0xff]
    %v132 = vld [vmem:[#allocation5 + $0x38] sm:$0xff]
    %v133 = vld [vmem:[#allocation5 + $0x40] sm:$0xff]
    %v134 = vld [vmem:[#allocation5 + $0x48] sm:$0xff]
    %v135 = vld [vmem:[#allocation5 + $0x50] sm:$0xff]
    %v136 = vld [vmem:[#allocation5 + $0x58] sm:$0xff]
    %v137 = vld [vmem:[#allocation5 + $0x60] sm:$0xff]
    %v138 = vld [vmem:[#allocation5 + $0x68] sm:$0xff]
    %v139 = vld [vmem:[#allocation5 + $0x70] sm:$0xff]
    %v140 = vld [vmem:[#allocation5 + $0x78] sm:$0xff]
    %v141 = vld [vmem:[#allocation5 + $0x80] sm:$0xff]
    %v142 = vld [vmem:[#allocation5 + $0x88] sm:$0xff]
    %v143 = vld [vmem:[#allocation5 + $0x90] sm:$0xff]
    %v144 = vld [vmem:[#allocation5 + $0x98] sm:$0xff]
    %v145 = vld [vmem:[#allocation5 + $0xa0] sm:$0xff]
    %v146 = vld [vmem:[#allocation5 + $0xa8] sm:$0xff]
    %v147 = vld [vmem:[#allocation5 + $0xb0] sm:$0xff]
    %v148 = vld [vmem:[#allocation5 + $0xb8] sm:$0xff]
    %v149 = vld [vmem:[#allocation5 + $0xc0] sm:$0xff]
    %v150 = vld [vmem:[#allocation5 + $0xc8] sm:$0xff]
    %v151 = vld [vmem:[#allocation5 + $0xd0] sm:$0xff]
    %v152 = vld [vmem:[#allocation5 + $0xd8] sm:$0xff]
    %v153 = vld [vmem:[#allocation5 + $0xe0] sm:$0xff]
    %v154 = vld [vmem:[#allocation5 + $0xe8] sm:$0xff]
    %v155 = vld [vmem:[#allocation5 + $0xf0] sm:$0xff]
    %v156 = vld [vmem:[#allocation5 + $0xf8] sm:$0xff]
    %v157 = vld [vmem:[#allocation5 + $0x100] sm:$0xff]
    %v158 = vld [vmem:[#allocation5 + $0x108] sm:$0xff]
    %v159 = vld [vmem:[#allocation5 + $0x110] sm:$0xff]
    %v160 = vld [vmem:[#allocation5 + $0x118] sm:$0xff]
    %v161 = vld [vmem:[#allocation5 + $0x120] sm:$0xff]
    %v162 = vld [vmem:[#allocation5 + $0x128] sm:$0xff]
    %v163 = vld [vmem:[#allocation5 + $0x130] sm:$0xff]
    %v164 = vld [vmem:[#allocation5 + $0x138] sm:$0xff]
    %v165 = vld [vmem:[#allocation5 + $0x140] sm:$0xff]
    %v166 = vld [vmem:[#allocation5 + $0x148] sm:$0xff]
    %v167 = vld [vmem:[#allocation5 + $0x150] sm:$0xff]
    %v168 = vld [vmem:[#allocation5 + $0x158] sm:$0xff]
    %v169 = vld [vmem:[#allocation5 + $0x160] sm:$0xff]
    %v170 = vld [vmem:[#allocation5 + $0x168] sm:$0xff]
    %v171 = vld [vmem:[#allocation5 + $0x170] sm:$0xff]
    %v172 = vld [vmem:[#allocation5 + $0x178] sm:$0xff]
    %v173 = vld [vmem:[#allocation5 + $0x180] sm:$0xff]
    %v174 = vld [vmem:[#allocation5 + $0x188] sm:$0xff]
    %v175 = vld [vmem:[#allocation5 + $0x190] sm:$0xff]
    %v176 = vld [vmem:[#allocation5 + $0x198] sm:$0xff]
    %v177 = vld [vmem:[#allocation5 + $0x1a0] sm:$0xff]
    %v178 = vld [vmem:[#allocation5 + $0x1a8] sm:$0xff]
    %v179 = vld [vmem:[#allocation5 + $0x1b0] sm:$0xff]
    %v180 = vld [vmem:[#allocation5 + $0x1b8] sm:$0xff]
    %v181 = vld [vmem:[#allocation5 + $0x1c0] sm:$0xff]
    %v182 = vld [vmem:[#allocation5 + $0x1c8] sm:$0xff]
    %v183 = vld [vmem:[#allocation5 + $0x1d0] sm:$0xff]
    %v184 = vld [vmem:[#allocation5 + $0x1d8] sm:$0xff]
    %v185 = vld [vmem:[#allocation5 + $0x1e0] sm:$0xff]
    %v186 = vld [vmem:[#allocation5 + $0x1e8] sm:$0xff]
    %v187 = vld [vmem:[#allocation5 + $0x1f0] sm:$0xff]
    %v188 = vld [vmem:[#allocation5 + $0x1f8] sm:$0xff]
    %v189 = vld [vmem:[#allocation5 + $0x200] sm:$0xff]
    %v190 = vld [vmem:[#allocation5 + $0x208] sm:$0xff]
    %v191 = vld [vmem:[#allocation5 + $0x210] sm:$0xff]
    %v192 = vld [vmem:[#allocation5 + $0x218] sm:$0xff]
    %v193 = vld [vmem:[#allocation5 + $0x220] sm:$0xff]
    %v194 = vld [vmem:[#allocation5 + $0x228] sm:$0xff]
    %v195 = vld [vmem:[#allocation5 + $0x230] sm:$0xff]
    %v196 = vld [vmem:[#allocation5 + $0x238] sm:$0xff]
    %v197 = vld [vmem:[#allocation5 + $0x240] sm:$0xff]
    %v198 = vld [vmem:[#allocation5 + $0x248] sm:$0xff]
    %v199 = vld [vmem:[#allocation5 + $0x250] sm:$0xff]
    %v200 = vld [vmem:[#allocation5 + $0x258] sm:$0xff]
    %v201 = vld [vmem:[#allocation5 + $0x260] sm:$0xff]
    %v202 = vld [vmem:[#allocation5 + $0x268] sm:$0xff]
    %v203 = vld [vmem:[#allocation5 + $0x270] sm:$0xff]
    %v204 = vld [vmem:[#allocation5 + $0x278] sm:$0xff]
    %v205 = vld [vmem:[#allocation5 + $0x280] sm:$0xff]
    %v206 = vld [vmem:[#allocation5 + $0x288] sm:$0xff]
    %v207 = vld [vmem:[#allocation5 + $0x290] sm:$0xff]
    %v208 = vld [vmem:[#allocation5 + $0x298] sm:$0xff]
    %v209 = vld [vmem:[#allocation5 + $0x2a0] sm:$0xff]
    %v210 = vld [vmem:[#allocation5 + $0x2a8] sm:$0xff]
    %v211 = vld [vmem:[#allocation5 + $0x2b0] sm:$0xff]
    %v212 = vld [vmem:[#allocation5 + $0x2b8] sm:$0xff]
    %v213 = vld [vmem:[#allocation5 + $0x2c0] sm:$0xff]
    %v214 = vld [vmem:[#allocation5 + $0x2c8] sm:$0xff]
    %v215 = vld [vmem:[#allocation5 + $0x2d0] sm:$0xff]
    %v216 = vld [vmem:[#allocation5 + $0x2d8] sm:$0xff]
    %v217 = vld [vmem:[#allocation5 + $0x2e0] sm:$0xff]
    %v218 = vld [vmem:[#allocation5 + $0x2e8] sm:$0xff]
    %v219 = vld [vmem:[#allocation5 + $0x2f0] sm:$0xff]
    %v220 = vld [vmem:[#allocation5 + $0x2f8] sm:$0xff]
    %v221 = vld [vmem:[#allocation5 + $0x300] sm:$0xff]
    %v222 = vld [vmem:[#allocation5 + $0x308] sm:$0xff]
    %v223 = vld [vmem:[#allocation5 + $0x310] sm:$0xff]
    %v224 = vld [vmem:[#allocation5 + $0x318] sm:$0xff]
    %v225 = vld [vmem:[#allocation5 + $0x320] sm:$0xff]
    %v226 = vld [vmem:[#allocation5 + $0x328] sm:$0xff]
    %v227 = vld [vmem:[#allocation5 + $0x330] sm:$0xff]
    %v228 = vld [vmem:[#allocation5 + $0x338] sm:$0xff]
    %v229 = vld [vmem:[#allocation5 + $0x340] sm:$0xff]
    %v230 = vld [vmem:[#allocation5 + $0x348] sm:$0xff]
    %v231 = vld [vmem:[#allocation5 + $0x350] sm:$0xff]
    %v232 = vld [vmem:[#allocation5 + $0x358] sm:$0xff]
    %v233 = vld [vmem:[#allocation5 + $0x360] sm:$0xff]
    %v234 = vld [vmem:[#allocation5 + $0x368] sm:$0xff]
    %v235 = vld [vmem:[#allocation5 + $0x370] sm:$0xff]
    %v236 = vld [vmem:[#allocation5 + $0x378] sm:$0xff]
    %v237 = vld [vmem:[#allocation5 + $0x380] sm:$0xff]
    %v238 = vld [vmem:[#allocation5 + $0x388] sm:$0xff]
    %v239 = vld [vmem:[#allocation5 + $0x390] sm:$0xff]
    %v240 = vld [vmem:[#allocation5 + $0x398] sm:$0xff]
    %v241 = vld [vmem:[#allocation5 + $0x3a0] sm:$0xff]
    %v242 = vld [vmem:[#allocation5 + $0x3a8] sm:$0xff]
    %v243 = vld [vmem:[#allocation5 + $0x3b0] sm:$0xff]
    %v244 = vld [vmem:[#allocation5 + $0x3b8] sm:$0xff]
    %v245 = vld [vmem:[#allocation5 + $0x3c0] sm:$0xff]
    %v246 = vld [vmem:[#allocation5 + $0x3c8] sm:$0xff]
    %v247 = vld [vmem:[#allocation5 + $0x3d0] sm:$0xff]
    %v248 = vld [vmem:[#allocation5 + $0x3d8] sm:$0xff]
    %v249 = vld [vmem:[#allocation5 + $0x3e0] sm:$0xff]
    %v250 = vld [vmem:[#allocation5 + $0x3e8] sm:$0xff]
    %v251 = vld [vmem:[#allocation5 + $0x3f0] sm:$0xff]
    %v252 = vld [vmem:[#allocation5 + $0x3f8] sm:$0xff]
    %v253 = vld [vmem:[#allocation5 + $0x400] sm:$0xff]
    %v254 = vld [vmem:[#allocation5 + $0x408] sm:$0xff]
    %v255 = vld [vmem:[#allocation5 + $0x410] sm:$0xff]
    %v256 = vld [vmem:[#allocation5 + $0x418] sm:$0xff]
    %v257 = vld [vmem:[#allocation5 + $0x420] sm:$0xff]
    %v258 = vld [vmem:[#allocation5 + $0x428] sm:$0xff]
    %v259 = vld [vmem:[#allocation5 + $0x430] sm:$0xff]
    %v260 = vld [vmem:[#allocation5 + $0x438] sm:$0xff]
    %v261 = vld [vmem:[#allocation5 + $0x440] sm:$0xff]
    %v262 = vld [vmem:[#allocation5 + $0x448] sm:$0xff]
    %v263 = vld [vmem:[#allocation5 + $0x450] sm:$0xff]
    %v264 = vld [vmem:[#allocation5 + $0x458] sm:$0xff]
    %v265 = vld [vmem:[#allocation5 + $0x460] sm:$0xff]
    %v266 = vld [vmem:[#allocation5 + $0x468] sm:$0xff]
    %v267 = vld [vmem:[#allocation5 + $0x470] sm:$0xff]
    %v268 = vld [vmem:[#allocation5 + $0x478] sm:$0xff]
    %v269 = vld [vmem:[#allocation5 + $0x480] sm:$0xff]
    %v270 = vld [vmem:[#allocation5 + $0x488] sm:$0xff]
    %v271 = vld [vmem:[#allocation5 + $0x490] sm:$0xff]
    %v272 = vld [vmem:[#allocation5 + $0x498] sm:$0xff]
    %v273 = vld [vmem:[#allocation5 + $0x4a0] sm:$0xff]
    %v274 = vld [vmem:[#allocation5 + $0x4a8] sm:$0xff]
    %v275 = vld [vmem:[#allocation5 + $0x4b0] sm:$0xff]
    %v276 = vld [vmem:[#allocation5 + $0x4b8] sm:$0xff]
    %v277 = vld [vmem:[#allocation5 + $0x4c0] sm:$0xff]
    %v278 = vld [vmem:[#allocation5 + $0x4c8] sm:$0xff]
    %v279 = vld [vmem:[#allocation5 + $0x4d0] sm:$0xff]
    %v280 = vld [vmem:[#allocation5 + $0x4d8] sm:$0xff]
    %v281 = vld [vmem:[#allocation5 + $0x4e0] sm:$0xff]
    %v282 = vld [vmem:[#allocation5 + $0x4e8] sm:$0xff]
    %v283 = vld [vmem:[#allocation5 + $0x4f0] sm:$0xff]
    %v284 = vld [vmem:[#allocation5 + $0x4f8] sm:$0xff]
    %v285 = vld [vmem:[#allocation5 + $0x500] sm:$0xff]
    %v286 = vld [vmem:[#allocation5 + $0x508] sm:$0xff]
    %v287 = vld [vmem:[#allocation5 + $0x510] sm:$0xff]
    %v288 = vld [vmem:[#allocation5 + $0x518] sm:$0xff]
    %v289 = vld [vmem:[#allocation5 + $0x520] sm:$0xff]
    %v290 = vld [vmem:[#allocation5 + $0x528] sm:$0xff]
    %v291 = vld [vmem:[#allocation5 + $0x530] sm:$0xff]
    %v292 = vld [vmem:[#allocation5 + $0x538] sm:$0xff]
    %v293 = vld [vmem:[#allocation5 + $0x540] sm:$0xff]
    %v294 = vld [vmem:[#allocation5 + $0x548] sm:$0xff]
    %v295 = vld [vmem:[#allocation5 + $0x550] sm:$0xff]
    %v296 = vld [vmem:[#allocation5 + $0x558] sm:$0xff]
    %v297 = vld [vmem:[#allocation5 + $0x560] sm:$0xff]
    %v298 = vld [vmem:[#allocation5 + $0x568] sm:$0xff]
    %v299 = vld [vmem:[#allocation5 + $0x570] sm:$0xff]
    %v300 = vld [vmem:[#allocation5 + $0x578] sm:$0xff]
    %v301 = vld [vmem:[#allocation5 + $0x580] sm:$0xff]
    %v302 = vld [vmem:[#allocation5 + $0x588] sm:$0xff]
    %v303 = vld [vmem:[#allocation5 + $0x590] sm:$0xff]
    %v304 = vld [vmem:[#allocation5 + $0x598] sm:$0xff]
    %v305 = vld [vmem:[#allocation5 + $0x5a0] sm:$0xff]
    %v306 = vld [vmem:[#allocation5 + $0x5a8] sm:$0xff]
    %v307 = vld [vmem:[#allocation5 + $0x5b0] sm:$0xff]
    %v308 = vld [vmem:[#allocation5 + $0x5b8] sm:$0xff]
    %v309 = vld [vmem:[#allocation5 + $0x5c0] sm:$0xff]
    %v310 = vld [vmem:[#allocation5 + $0x5c8] sm:$0xff]
    %v311 = vld [vmem:[#allocation5 + $0x5d0] sm:$0xff]
    %v312 = vld [vmem:[#allocation5 + $0x5d8] sm:$0xff]
    %v313 = vld [vmem:[#allocation5 + $0x5e0] sm:$0xff]
    %v314 = vld [vmem:[#allocation5 + $0x5e8] sm:$0xff]
    %v315 = vld [vmem:[#allocation5 + $0x5f0] sm:$0xff]
    %v316 = vld [vmem:[#allocation5 + $0x5f8] sm:$0xff]
    %v317 = vld [vmem:[#allocation5 + $0x600] sm:$0xff]
    %v318 = vld [vmem:[#allocation5 + $0x608] sm:$0xff]
    %v319 = vld [vmem:[#allocation5 + $0x610] sm:$0xff]
    %v320 = vld [vmem:[#allocation5 + $0x618] sm:$0xff]
    %v321 = vld [vmem:[#allocation7] sm:$0xf]
    %v323 = vlaneseq
    %v324 = vshrl.u32 %v323, 7
    %v325 = vsub.s32 0, %v324
    %v326 = vrot.slane %v321, %v325
    %v327 = vlaneseq
    %v328 = vshrl.u32 %v327, 7
    %v329 = vsub.s32 1, %v328
    %v330 = vrot.slane %v321, %v329
    %v331 = vlaneseq
    %v332 = vshrl.u32 %v331, 7
    %v333 = vsub.s32 2, %v332
    %v334 = vrot.slane %v321, %v333
    %v335 = vlaneseq
    %v336 = vshrl.u32 %v335, 7
    %v337 = vsub.s32 3, %v336
    %v338 = vrot.slane %v321, %v337
    %v351 = vunpack.c.l.b16 %v117
    %v352 = vunpack.c.h.b16 %v117
    %v353 = vunpack.c.l.b16 %v118
    %v354 = vunpack.c.h.b16 %v118
    %v355 = vunpack.c.l.b16 %v119
    %v356 = vunpack.c.h.b16 %v119
    %v357 = vunpack.c.l.b16 %v120
    %v358 = vunpack.c.l.b16 %v121
    %v359 = vunpack.c.h.b16 %v121
    %v360 = vunpack.c.l.b16 %v122
    %v361 = vunpack.c.h.b16 %v122
    %v362 = vunpack.c.l.b16 %v123
    %v363 = vunpack.c.h.b16 %v123
    %v364 = vunpack.c.l.b16 %v124
    %v365 = vpack.c.b16 %v358, %v351
    %v366 = vpack.c.b16 %v359, %v352
    %v367 = vpack.c.b16 %v360, %v353
    %v368 = vpack.c.b16 %v361, %v354
    %v369 = vpack.c.b16 %v362, %v355
    %v370 = vpack.c.b16 %v363, %v356
    %v371 = vpack.c.b16 %v364, %v357
    %v574 = vunpack.c.l.b16 %v125
    %v575 = vunpack.c.h.b16 %v125
    %v576 = vunpack.c.l.b16 %v126
    %v577 = vunpack.c.h.b16 %v126
    %v578 = vunpack.c.l.b16 %v127
    %v579 = vunpack.c.h.b16 %v127
    %v580 = vunpack.c.l.b16 %v128
    %v581 = vunpack.c.h.b16 %v128
    %v582 = vunpack.c.l.b16 %v129
    %v583 = vunpack.c.h.b16 %v129
    %v584 = vunpack.c.l.b16 %v130
    %v585 = vunpack.c.h.b16 %v130
    %v586 = vunpack.c.l.b16 %v131
    %v587 = vunpack.c.h.b16 %v131
    %v588 = vunpack.c.l.b16 %v132
    %v589 = vunpack.c.h.b16 %v132
    %v590 = vunpack.c.l.b16 %v133
    %v591 = vunpack.c.h.b16 %v133
    %v592 = vunpack.c.l.b16 %v134
    %v593 = vunpack.c.h.b16 %v134
    %v594 = vunpack.c.l.b16 %v135
    %v595 = vunpack.c.h.b16 %v135
    %v596 = vunpack.c.l.b16 %v136
    %v597 = vunpack.c.h.b16 %v136
    %v598 = vunpack.c.l.b16 %v137
    %v599 = vunpack.c.h.b16 %v137
    %v600 = vunpack.c.l.b16 %v138
    %v601 = vunpack.c.h.b16 %v138
    %v602 = vunpack.c.l.b16 %v139
    %v603 = vunpack.c.h.b16 %v139
    %v604 = vunpack.c.l.b16 %v140
    %v605 = vunpack.c.h.b16 %v140
    %v606 = vunpack.c.l.b16 %v141
    %v607 = vunpack.c.h.b16 %v141
    %v608 = vunpack.c.l.b16 %v142
    %v609 = vunpack.c.h.b16 %v142
    %v610 = vunpack.c.l.b16 %v143
    %v611 = vunpack.c.h.b16 %v143
    %v612 = vunpack.c.l.b16 %v144
    %v613 = vunpack.c.h.b16 %v144
    %v614 = vunpack.c.l.b16 %v145
    %v615 = vunpack.c.h.b16 %v145
    %v616 = vunpack.c.l.b16 %v146
    %v617 = vunpack.c.h.b16 %v146
    %v618 = vunpack.c.l.b16 %v147
    %v619 = vunpack.c.h.b16 %v147
    %v620 = vunpack.c.l.b16 %v148
    %v621 = vunpack.c.h.b16 %v148
    %v622 = vunpack.c.l.b16 %v149
    %v623 = vunpack.c.h.b16 %v149
    %v624 = vunpack.c.l.b16 %v150
    %v625 = vunpack.c.h.b16 %v150
    %v626 = vunpack.c.l.b16 %v151
    %v627 = vunpack.c.h.b16 %v151
    %v628 = vunpack.c.l.b16 %v152
    %v629 = vunpack.c.h.b16 %v152
    %v630 = vunpack.c.l.b16 %v153
    %v631 = vunpack.c.h.b16 %v153
    %v632 = vunpack.c.l.b16 %v154
    %v633 = vunpack.c.h.b16 %v154
    %v634 = vunpack.c.l.b16 %v155
    %v635 = vunpack.c.h.b16 %v155
    %v636 = vunpack.c.l.b16 %v156
    %v637 = vunpack.c.h.b16 %v156
    %v638 = vunpack.c.l.b16 %v157
    %v639 = vunpack.c.h.b16 %v157
    %v640 = vunpack.c.l.b16 %v158
    %v641 = vunpack.c.h.b16 %v158
    %v642 = vunpack.c.l.b16 %v159
    %v643 = vunpack.c.h.b16 %v159
    %v644 = vunpack.c.l.b16 %v160
    %v645 = vunpack.c.h.b16 %v160
    %v646 = vunpack.c.l.b16 %v161
    %v647 = vunpack.c.h.b16 %v161
    %v648 = vunpack.c.l.b16 %v162
    %v649 = vunpack.c.h.b16 %v162
    %v650 = vunpack.c.l.b16 %v163
    %v651 = vunpack.c.h.b16 %v163
    %v652 = vunpack.c.l.b16 %v164
    %v653 = vunpack.c.h.b16 %v164
    %v654 = vunpack.c.l.b16 %v165
    %v655 = vunpack.c.h.b16 %v165
    %v656 = vunpack.c.l.b16 %v166
    %v657 = vunpack.c.h.b16 %v166
    %v658 = vunpack.c.l.b16 %v167
    %v659 = vunpack.c.h.b16 %v167
    %v660 = vunpack.c.l.b16 %v168
    %v661 = vunpack.c.h.b16 %v168
    %v662 = vunpack.c.l.b16 %v169
    %v663 = vunpack.c.h.b16 %v169
    %v664 = vunpack.c.l.b16 %v170
    %v665 = vunpack.c.h.b16 %v170
    %v666 = vunpack.c.l.b16 %v171
    %v667 = vunpack.c.h.b16 %v171
    %v668 = vunpack.c.l.b16 %v172
    %v669 = vunpack.c.h.b16 %v172
    %v670 = vunpack.c.l.b16 %v173
    %v671 = vunpack.c.h.b16 %v173
    %v672 = vunpack.c.l.b16 %v174
    %v673 = vunpack.c.h.b16 %v174
    %v674 = vunpack.c.l.b16 %v175
    %v675 = vunpack.c.h.b16 %v175
    %v676 = vunpack.c.l.b16 %v176
    %v677 = vunpack.c.h.b16 %v176
    %v678 = vunpack.c.l.b16 %v177
    %v679 = vunpack.c.h.b16 %v177
    %v680 = vunpack.c.l.b16 %v178
    %v681 = vunpack.c.h.b16 %v178
    %v682 = vunpack.c.l.b16 %v179
    %v683 = vunpack.c.h.b16 %v179
    %v684 = vunpack.c.l.b16 %v180
    %v685 = vunpack.c.h.b16 %v180
    %v686 = vunpack.c.l.b16 %v181
    %v687 = vunpack.c.h.b16 %v181
    %v688 = vunpack.c.l.b16 %v182
    %v689 = vunpack.c.h.b16 %v182
    %v690 = vunpack.c.l.b16 %v183
    %v691 = vunpack.c.h.b16 %v183
    %v692 = vunpack.c.l.b16 %v184
    %v693 = vunpack.c.h.b16 %v184
    %v694 = vunpack.c.l.b16 %v185
    %v695 = vunpack.c.h.b16 %v185
    %v696 = vunpack.c.l.b16 %v186
    %v697 = vunpack.c.h.b16 %v186
    %v698 = vunpack.c.l.b16 %v187
    %v699 = vunpack.c.h.b16 %v187
    %v700 = vunpack.c.l.b16 %v188
    %v701 = vunpack.c.h.b16 %v188
    %v702 = vunpack.c.l.b16 %v189
    %v703 = vunpack.c.h.b16 %v189
    %v704 = vunpack.c.l.b16 %v190
    %v705 = vunpack.c.h.b16 %v190
    %v706 = vunpack.c.l.b16 %v191
    %v707 = vunpack.c.h.b16 %v191
    %v708 = vunpack.c.l.b16 %v192
    %v709 = vunpack.c.h.b16 %v192
    %v710 = vunpack.c.l.b16 %v193
    %v711 = vunpack.c.h.b16 %v193
    %v712 = vunpack.c.l.b16 %v194
    %v713 = vunpack.c.h.b16 %v194
    %v714 = vunpack.c.l.b16 %v195
    %v715 = vunpack.c.h.b16 %v195
    %v716 = vunpack.c.l.b16 %v196
    %v717 = vunpack.c.h.b16 %v196
    %v718 = vunpack.c.l.b16 %v197
    %v719 = vunpack.c.h.b16 %v197
    %v720 = vunpack.c.l.b16 %v198
    %v721 = vunpack.c.h.b16 %v198
    %v722 = vunpack.c.l.b16 %v199
    %v723 = vunpack.c.h.b16 %v199
    %v724 = vunpack.c.l.b16 %v200
    %v725 = vunpack.c.h.b16 %v200
    %v726 = vunpack.c.l.b16 %v201
    %v727 = vunpack.c.h.b16 %v201
    %v728 = vunpack.c.l.b16 %v202
    %v729 = vunpack.c.h.b16 %v202
    %v730 = vunpack.c.l.b16 %v203
    %v731 = vunpack.c.h.b16 %v203
    %v732 = vunpack.c.l.b16 %v204
    %v733 = vunpack.c.h.b16 %v204
    %v734 = vunpack.c.l.b16 %v205
    %v735 = vunpack.c.h.b16 %v205
    %v736 = vunpack.c.l.b16 %v206
    %v737 = vunpack.c.h.b16 %v206
    %v738 = vunpack.c.l.b16 %v207
    %v739 = vunpack.c.h.b16 %v207
    %v740 = vunpack.c.l.b16 %v208
    %v741 = vunpack.c.h.b16 %v208
    %v742 = vunpack.c.l.b16 %v209
    %v743 = vunpack.c.h.b16 %v209
    %v744 = vunpack.c.l.b16 %v210
    %v745 = vunpack.c.h.b16 %v210
    %v746 = vunpack.c.l.b16 %v211
    %v747 = vunpack.c.h.b16 %v211
    %v748 = vunpack.c.l.b16 %v212
    %v749 = vunpack.c.h.b16 %v212
    %v750 = vunpack.c.l.b16 %v213
    %v751 = vunpack.c.h.b16 %v213
    %v752 = vunpack.c.l.b16 %v214
    %v753 = vunpack.c.h.b16 %v214
    %v754 = vunpack.c.l.b16 %v215
    %v755 = vunpack.c.h.b16 %v215
    %v756 = vunpack.c.l.b16 %v216
    %v757 = vunpack.c.h.b16 %v216
    %v758 = vunpack.c.l.b16 %v217
    %v759 = vunpack.c.h.b16 %v217
    %v760 = vunpack.c.l.b16 %v218
    %v761 = vunpack.c.h.b16 %v218
    %v762 = vunpack.c.l.b16 %v219
    %v763 = vunpack.c.h.b16 %v219
    %v764 = vunpack.c.l.b16 %v220
    %v765 = vunpack.c.h.b16 %v220
    %v766 = vunpack.c.l.b16 %v221
    %v767 = vunpack.c.h.b16 %v221
    %v768 = vunpack.c.l.b16 %v222
    %v769 = vunpack.c.h.b16 %v222
    %v770 = vunpack.c.l.b16 %v223
    %v771 = vunpack.c.h.b16 %v223
    %v772 = vunpack.c.l.b16 %v224
    %v773 = vunpack.c.h.b16 %v224
    %v774 = vunpack.c.l.b16 %v225
    %v775 = vunpack.c.h.b16 %v225
    %v776 = vunpack.c.l.b16 %v226
    %v777 = vunpack.c.h.b16 %v226
    %v778 = vunpack.c.l.b16 %v227
    %v779 = vunpack.c.h.b16 %v227
    %v780 = vunpack.c.l.b16 %v228
    %v781 = vunpack.c.h.b16 %v228
    %v782 = vunpack.c.l.b16 %v229
    %v783 = vunpack.c.h.b16 %v229
    %v784 = vunpack.c.l.b16 %v230
    %v785 = vunpack.c.h.b16 %v230
    %v786 = vunpack.c.l.b16 %v231
    %v787 = vunpack.c.h.b16 %v231
    %v788 = vunpack.c.l.b16 %v232
    %v789 = vunpack.c.h.b16 %v232
    %v790 = vunpack.c.l.b16 %v233
    %v791 = vunpack.c.h.b16 %v233
    %v792 = vunpack.c.l.b16 %v234
    %v793 = vunpack.c.h.b16 %v234
    %v794 = vunpack.c.l.b16 %v235
    %v795 = vunpack.c.h.b16 %v235
    %v796 = vunpack.c.l.b16 %v236
    %v797 = vunpack.c.h.b16 %v236
    %v798 = vunpack.c.l.b16 %v237
    %v799 = vunpack.c.h.b16 %v237
    %v800 = vunpack.c.l.b16 %v238
    %v801 = vunpack.c.h.b16 %v238
    %v802 = vunpack.c.l.b16 %v239
    %v803 = vunpack.c.h.b16 %v239
    %v804 = vunpack.c.l.b16 %v240
    %v805 = vunpack.c.h.b16 %v240
    %v806 = vunpack.c.l.b16 %v241
    %v807 = vunpack.c.h.b16 %v241
    %v808 = vunpack.c.l.b16 %v242
    %v809 = vunpack.c.h.b16 %v242
    %v810 = vunpack.c.l.b16 %v243
    %v811 = vunpack.c.h.b16 %v243
    %v812 = vunpack.c.l.b16 %v244
    %v813 = vunpack.c.h.b16 %v244
    %v814 = vunpack.c.l.b16 %v245
    %v815 = vunpack.c.h.b16 %v245
    %v816 = vunpack.c.l.b16 %v246
    %v817 = vunpack.c.h.b16 %v246
    %v818 = vunpack.c.l.b16 %v247
    %v819 = vunpack.c.h.b16 %v247
    %v820 = vunpack.c.l.b16 %v248
    %v821 = vunpack.c.h.b16 %v248
    %v822 = vunpack.c.l.b16 %v249
    %v823 = vunpack.c.h.b16 %v249
    %v824 = vunpack.c.l.b16 %v250
    %v825 = vunpack.c.h.b16 %v250
    %v826 = vunpack.c.l.b16 %v251
    %v827 = vunpack.c.h.b16 %v251
    %v828 = vunpack.c.l.b16 %v252
    %v829 = vunpack.c.h.b16 %v252
    %v830 = vunpack.c.l.b16 %v253
    %v831 = vunpack.c.h.b16 %v253
    %v832 = vunpack.c.l.b16 %v254
    %v833 = vunpack.c.h.b16 %v254
    %v834 = vunpack.c.l.b16 %v255
    %v835 = vunpack.c.h.b16 %v255
    %v836 = vunpack.c.l.b16 %v256
    %v837 = vunpack.c.h.b16 %v256
    %v838 = vunpack.c.l.b16 %v257
    %v839 = vunpack.c.h.b16 %v257
    %v840 = vunpack.c.l.b16 %v258
    %v841 = vunpack.c.h.b16 %v258
    %v842 = vunpack.c.l.b16 %v259
    %v843 = vunpack.c.h.b16 %v259
    %v844 = vunpack.c.l.b16 %v260
    %v845 = vunpack.c.h.b16 %v260
    %v846 = vunpack.c.l.b16 %v261
    %v847 = vunpack.c.h.b16 %v261
    %v848 = vunpack.c.l.b16 %v262
    %v849 = vunpack.c.h.b16 %v262
    %v850 = vunpack.c.l.b16 %v263
    %v851 = vunpack.c.h.b16 %v263
    %v852 = vunpack.c.l.b16 %v264
    %v853 = vunpack.c.h.b16 %v264
    %v854 = vunpack.c.l.b16 %v265
    %v855 = vunpack.c.h.b16 %v265
    %v856 = vunpack.c.l.b16 %v266
    %v857 = vunpack.c.h.b16 %v266
    %v858 = vunpack.c.l.b16 %v267
    %v859 = vunpack.c.h.b16 %v267
    %v860 = vunpack.c.l.b16 %v268
    %v861 = vunpack.c.h.b16 %v268
    %v862 = vunpack.c.l.b16 %v269
    %v863 = vunpack.c.h.b16 %v269
    %v864 = vunpack.c.l.b16 %v270
    %v865 = vunpack.c.h.b16 %v270
    %v866 = vunpack.c.l.b16 %v271
    %v867 = vunpack.c.h.b16 %v271
    %v868 = vunpack.c.l.b16 %v272
    %v869 = vunpack.c.h.b16 %v272
    %v870 = vunpack.c.l.b16 %v273
    %v871 = vunpack.c.h.b16 %v273
    %v872 = vunpack.c.l.b16 %v274
    %v873 = vunpack.c.h.b16 %v274
    %v874 = vunpack.c.l.b16 %v275
    %v875 = vunpack.c.h.b16 %v275
    %v876 = vunpack.c.l.b16 %v276
    %v877 = vunpack.c.h.b16 %v276
    %v878 = vunpack.c.l.b16 %v277
    %v879 = vunpack.c.h.b16 %v277
    %v880 = vunpack.c.l.b16 %v278
    %v881 = vunpack.c.h.b16 %v278
    %v882 = vunpack.c.l.b16 %v279
    %v883 = vunpack.c.h.b16 %v279
    %v884 = vunpack.c.l.b16 %v280
    %v885 = vunpack.c.h.b16 %v280
    %v886 = vunpack.c.l.b16 %v281
    %v887 = vunpack.c.h.b16 %v281
    %v888 = vunpack.c.l.b16 %v282
    %v889 = vunpack.c.h.b16 %v282
    %v890 = vunpack.c.l.b16 %v283
    %v891 = vunpack.c.h.b16 %v283
    %v892 = vunpack.c.l.b16 %v284
    %v893 = vunpack.c.h.b16 %v284
    %v894 = vunpack.c.l.b16 %v285
    %v895 = vunpack.c.h.b16 %v285
    %v896 = vunpack.c.l.b16 %v286
    %v897 = vunpack.c.h.b16 %v286
    %v898 = vunpack.c.l.b16 %v287
    %v899 = vunpack.c.h.b16 %v287
    %v900 = vunpack.c.l.b16 %v288
    %v901 = vunpack.c.h.b16 %v288
    %v902 = vunpack.c.l.b16 %v289
    %v903 = vunpack.c.h.b16 %v289
    %v904 = vunpack.c.l.b16 %v290
    %v905 = vunpack.c.h.b16 %v290
    %v906 = vunpack.c.l.b16 %v291
    %v907 = vunpack.c.h.b16 %v291
    %v908 = vunpack.c.l.b16 %v292
    %v909 = vunpack.c.h.b16 %v292
    %v910 = vunpack.c.l.b16 %v293
    %v911 = vunpack.c.h.b16 %v293
    %v912 = vunpack.c.l.b16 %v294
    %v913 = vunpack.c.h.b16 %v294
    %v914 = vunpack.c.l.b16 %v295
    %v915 = vunpack.c.h.b16 %v295
    %v916 = vunpack.c.l.b16 %v296
    %v917 = vunpack.c.h.b16 %v296
    %v918 = vunpack.c.l.b16 %v297
    %v919 = vunpack.c.h.b16 %v297
    %v920 = vunpack.c.l.b16 %v298
    %v921 = vunpack.c.h.b16 %v298
    %v922 = vunpack.c.l.b16 %v299
    %v923 = vunpack.c.h.b16 %v299
    %v924 = vunpack.c.l.b16 %v300
    %v925 = vunpack.c.h.b16 %v300
    %v926 = vunpack.c.l.b16 %v301
    %v927 = vunpack.c.h.b16 %v301
    %v928 = vunpack.c.l.b16 %v302
    %v929 = vunpack.c.h.b16 %v302
    %v930 = vunpack.c.l.b16 %v303
    %v931 = vunpack.c.h.b16 %v303
    %v932 = vunpack.c.l.b16 %v304
    %v933 = vunpack.c.h.b16 %v304
    %v934 = vunpack.c.l.b16 %v305
    %v935 = vunpack.c.h.b16 %v305
    %v936 = vunpack.c.l.b16 %v306
    %v937 = vunpack.c.h.b16 %v306
    %v938 = vunpack.c.l.b16 %v307
    %v939 = vunpack.c.h.b16 %v307
    %v940 = vunpack.c.l.b16 %v308
    %v941 = vunpack.c.h.b16 %v308
    %v942 = vunpack.c.l.b16 %v309
    %v943 = vunpack.c.h.b16 %v309
    %v944 = vunpack.c.l.b16 %v310
    %v945 = vunpack.c.h.b16 %v310
    %v946 = vunpack.c.l.b16 %v311
    %v947 = vunpack.c.h.b16 %v311
    %v948 = vunpack.c.l.b16 %v312
    %v949 = vunpack.c.h.b16 %v312
    %v950 = vunpack.c.l.b16 %v313
    %v951 = vunpack.c.h.b16 %v313
    %v952 = vunpack.c.l.b16 %v314
    %v953 = vunpack.c.h.b16 %v314
    %v954 = vunpack.c.l.b16 %v315
    %v955 = vunpack.c.h.b16 %v315
    %v956 = vunpack.c.l.b16 %v316
    %v957 = vunpack.c.h.b16 %v316
    %v958 = vunpack.c.l.b16 %v317
    %v959 = vunpack.c.h.b16 %v317
    %v960 = vunpack.c.l.b16 %v318
    %v961 = vunpack.c.h.b16 %v318
    %v962 = vunpack.c.l.b16 %v319
    %v963 = vunpack.c.h.b16 %v319
    %v964 = vunpack.c.l.b16 %v320
    %v965 = vunpack.c.h.b16 %v320
    %v966 = vpack.c.b16 %v578, %v574
    %v967 = vpack.c.b16 %v579, %v575
    %v968 = vpack.c.b16 %v580, %v576
    %v969 = vpack.c.b16 %v581, %v577
    %v970 = vpack.c.b16 %v586, %v582
    %v971 = vpack.c.b16 %v587, %v583
    %v972 = vpack.c.b16 %v588, %v584
    %v973 = vpack.c.b16 %v589, %v585
    %v974 = vpack.c.b16 %v594, %v590
    %v975 = vpack.c.b16 %v595, %v591
    %v976 = vpack.c.b16 %v596, %v592
    %v977 = vpack.c.b16 %v597, %v593
    %v978 = vpack.c.b16 %v602, %v598
    %v979 = vpack.c.b16 %v603, %v599
    %v980 = vpack.c.b16 %v604, %v600
    %v981 = vpack.c.b16 %v605, %v601
    %v982 = vpack.c.b16 %v610, %v606
    %v983 = vpack.c.b16 %v611, %v607
    %v984 = vpack.c.b16 %v612, %v608
    %v985 = vpack.c.b16 %v613, %v609
    %v986 = vpack.c.b16 %v618, %v614
    %v987 = vpack.c.b16 %v619, %v615
    %v988 = vpack.c.b16 %v620, %v616
    %v989 = vpack.c.b16 %v621, %v617
    %v990 = vpack.c.b16 %v626, %v622
    %v991 = vpack.c.b16 %v627, %v623
    %v992 = vpack.c.b16 %v628, %v624
    %v993 = vpack.c.b16 %v629, %v625
    %v994 = vpack.c.b16 %v634, %v630
    %v995 = vpack.c.b16 %v635, %v631
    %v996 = vpack.c.b16 %v636, %v632
    %v997 = vpack.c.b16 %v637, %v633
    %v998 = vpack.c.b16 %v642, %v638
    %v999 = vpack.c.b16 %v643, %v639
    %v1000 = vpack.c.b16 %v644, %v640
    %v1001 = vpack.c.b16 %v645, %v641
    %v1002 = vpack.c.b16 %v650, %v646
    %v1003 = vpack.c.b16 %v651, %v647
    %v1004 = vpack.c.b16 %v652, %v648
    %v1005 = vpack.c.b16 %v653, %v649
    %v1006 = vpack.c.b16 %v658, %v654
    %v1007 = vpack.c.b16 %v659, %v655
    %v1008 = vpack.c.b16 %v660, %v656
    %v1009 = vpack.c.b16 %v661, %v657
    %v1010 = vpack.c.b16 %v666, %v662
    %v1011 = vpack.c.b16 %v667, %v663
    %v1012 = vpack.c.b16 %v668, %v664
    %v1013 = vpack.c.b16 %v669, %v665
    %v1014 = vpack.c.b16 %v674, %v670
    %v1015 = vpack.c.b16 %v675, %v671
    %v1016 = vpack.c.b16 %v676, %v672
    %v1017 = vpack.c.b16 %v677, %v673
    %v1018 = vpack.c.b16 %v682, %v678
    %v1019 = vpack.c.b16 %v683, %v679
    %v1020 = vpack.c.b16 %v684, %v680
    %v1021 = vpack.c.b16 %v685, %v681
    %v1022 = vpack.c.b16 %v690, %v686
    %v1023 = vpack.c.b16 %v691, %v687
    %v1024 = vpack.c.b16 %v692, %v688
    %v1025 = vpack.c.b16 %v693, %v689
    %v1026 = vpack.c.b16 %v698, %v694
    %v1027 = vpack.c.b16 %v699, %v695
    %v1028 = vpack.c.b16 %v700, %v696
    %v1029 = vpack.c.b16 %v701, %v697
    %v1030 = vpack.c.b16 %v706, %v702
    %v1031 = vpack.c.b16 %v707, %v703
    %v1032 = vpack.c.b16 %v708, %v704
    %v1033 = vpack.c.b16 %v709, %v705
    %v1034 = vpack.c.b16 %v714, %v710
    %v1035 = vpack.c.b16 %v715, %v711
    %v1036 = vpack.c.b16 %v716, %v712
    %v1037 = vpack.c.b16 %v717, %v713
    %v1038 = vpack.c.b16 %v722, %v718
    %v1039 = vpack.c.b16 %v723, %v719
    %v1040 = vpack.c.b16 %v724, %v720
    %v1041 = vpack.c.b16 %v725, %v721
    %v1042 = vpack.c.b16 %v730, %v726
    %v1043 = vpack.c.b16 %v731, %v727
    %v1044 = vpack.c.b16 %v732, %v728
    %v1045 = vpack.c.b16 %v733, %v729
    %v1046 = vpack.c.b16 %v738, %v734
    %v1047 = vpack.c.b16 %v739, %v735
    %v1048 = vpack.c.b16 %v740, %v736
    %v1049 = vpack.c.b16 %v741, %v737
    %v1050 = vpack.c.b16 %v746, %v742
    %v1051 = vpack.c.b16 %v747, %v743
    %v1052 = vpack.c.b16 %v748, %v744
    %v1053 = vpack.c.b16 %v749, %v745
    %v1054 = vpack.c.b16 %v754, %v750
    %v1055 = vpack.c.b16 %v755, %v751
    %v1056 = vpack.c.b16 %v756, %v752
    %v1057 = vpack.c.b16 %v757, %v753
    %v1058 = vpack.c.b16 %v762, %v758
    %v1059 = vpack.c.b16 %v763, %v759
    %v1060 = vpack.c.b16 %v764, %v760
    %v1061 = vpack.c.b16 %v765, %v761
    %v1062 = vpack.c.b16 %v770, %v766
    %v1063 = vpack.c.b16 %v771, %v767
    %v1064 = vpack.c.b16 %v772, %v768
    %v1065 = vpack.c.b16 %v773, %v769
    %v1066 = vpack.c.b16 %v778, %v774
    %v1067 = vpack.c.b16 %v779, %v775
    %v1068 = vpack.c.b16 %v780, %v776
    %v1069 = vpack.c.b16 %v781, %v777
    %v1070 = vpack.c.b16 %v786, %v782
    %v1071 = vpack.c.b16 %v787, %v783
    %v1072 = vpack.c.b16 %v788, %v784
    %v1073 = vpack.c.b16 %v789, %v785
    %v1074 = vpack.c.b16 %v794, %v790
    %v1075 = vpack.c.b16 %v795, %v791
    %v1076 = vpack.c.b16 %v796, %v792
    %v1077 = vpack.c.b16 %v797, %v793
    %v1078 = vpack.c.b16 %v802, %v798
    %v1079 = vpack.c.b16 %v803, %v799
    %v1080 = vpack.c.b16 %v804, %v800
    %v1081 = vpack.c.b16 %v805, %v801
    %v1082 = vpack.c.b16 %v810, %v806
    %v1083 = vpack.c.b16 %v811, %v807
    %v1084 = vpack.c.b16 %v812, %v808
    %v1085 = vpack.c.b16 %v813, %v809
    %v1086 = vpack.c.b16 %v818, %v814
    %v1087 = vpack.c.b16 %v819, %v815
    %v1088 = vpack.c.b16 %v820, %v816
    %v1089 = vpack.c.b16 %v821, %v817
    %v1090 = vpack.c.b16 %v826, %v822
    %v1091 = vpack.c.b16 %v827, %v823
    %v1092 = vpack.c.b16 %v828, %v824
    %v1093 = vpack.c.b16 %v829, %v825
    %v1094 = vpack.c.b16 %v834, %v830
    %v1095 = vpack.c.b16 %v835, %v831
    %v1096 = vpack.c.b16 %v836, %v832
    %v1097 = vpack.c.b16 %v837, %v833
    %v1098 = vpack.c.b16 %v842, %v838
    %v1099 = vpack.c.b16 %v843, %v839
    %v1100 = vpack.c.b16 %v844, %v840
    %v1101 = vpack.c.b16 %v845, %v841
    %v1102 = vpack.c.b16 %v850, %v846
    %v1103 = vpack.c.b16 %v851, %v847
    %v1104 = vpack.c.b16 %v852, %v848
    %v1105 = vpack.c.b16 %v853, %v849
    %v1106 = vpack.c.b16 %v858, %v854
    %v1107 = vpack.c.b16 %v859, %v855
    %v1108 = vpack.c.b16 %v860, %v856
    %v1109 = vpack.c.b16 %v861, %v857
    %v1110 = vpack.c.b16 %v866, %v862
    %v1111 = vpack.c.b16 %v867, %v863
    %v1112 = vpack.c.b16 %v868, %v864
    %v1113 = vpack.c.b16 %v869, %v865
    %v1114 = vpack.c.b16 %v874, %v870
    %v1115 = vpack.c.b16 %v875, %v871
    %v1116 = vpack.c.b16 %v876, %v872
    %v1117 = vpack.c.b16 %v877, %v873
    %v1118 = vpack.c.b16 %v882, %v878
    %v1119 = vpack.c.b16 %v883, %v879
    %v1120 = vpack.c.b16 %v884, %v880
    %v1121 = vpack.c.b16 %v885, %v881
    %v1122 = vpack.c.b16 %v890, %v886
    %v1123 = vpack.c.b16 %v891, %v887
    %v1124 = vpack.c.b16 %v892, %v888
    %v1125 = vpack.c.b16 %v893, %v889
    %v1126 = vpack.c.b16 %v898, %v894
    %v1127 = vpack.c.b16 %v899, %v895
    %v1128 = vpack.c.b16 %v900, %v896
    %v1129 = vpack.c.b16 %v901, %v897
    %v1130 = vpack.c.b16 %v906, %v902
    %v1131 = vpack.c.b16 %v907, %v903
    %v1132 = vpack.c.b16 %v908, %v904
    %v1133 = vpack.c.b16 %v909, %v905
    %v1134 = vpack.c.b16 %v914, %v910
    %v1135 = vpack.c.b16 %v915, %v911
    %v1136 = vpack.c.b16 %v916, %v912
    %v1137 = vpack.c.b16 %v917, %v913
    %v1138 = vpack.c.b16 %v922, %v918
    %v1139 = vpack.c.b16 %v923, %v919
    %v1140 = vpack.c.b16 %v924, %v920
    %v1141 = vpack.c.b16 %v925, %v921
    %v1142 = vpack.c.b16 %v930, %v926
    %v1143 = vpack.c.b16 %v931, %v927
    %v1144 = vpack.c.b16 %v932, %v928
    %v1145 = vpack.c.b16 %v933, %v929
    %v1146 = vpack.c.b16 %v938, %v934
    %v1147 = vpack.c.b16 %v939, %v935
    %v1148 = vpack.c.b16 %v940, %v936
    %v1149 = vpack.c.b16 %v941, %v937
    %v1150 = vpack.c.b16 %v946, %v942
    %v1151 = vpack.c.b16 %v947, %v943
    %v1152 = vpack.c.b16 %v948, %v944
    %v1153 = vpack.c.b16 %v949, %v945
    %v1154 = vpack.c.b16 %v954, %v950
    %v1155 = vpack.c.b16 %v955, %v951
    %v1156 = vpack.c.b16 %v956, %v952
    %v1157 = vpack.c.b16 %v957, %v953
    %v1158 = vpack.c.b16 %v962, %v958
    %v1159 = vpack.c.b16 %v963, %v959
    %v1160 = vpack.c.b16 %v964, %v960
    %v1161 = vpack.c.b16 %v965, %v961
    %vm1358 = vcmask 130048
    %v1360 = vsel %vm1358, %v371, 0
    %1362 = vmatprep.subr.bf16.mxu0 %v967
    %1363 = vmatpush1.bf16.msra.mxu0 %v966
    %1364 = vmatprep.subr.bf16.mxu0 %v971
    %1365 = vmatpush1.bf16.msra.mxu0 %v970
    %1366 = vmatprep.subr.bf16.mxu0 %v975
    %1367 = vmatpush1.bf16.msra.mxu0 %v974
    %1368 = vmatprep.subr.bf16.mxu0 %v979
    %1369 = vmatpush1.bf16.msra.mxu0 %v978
    %1370 = vmatprep.subr.bf16.mxu0 %v983
    %1371 = vmatpush1.bf16.msra.mxu0 %v982
    %1372 = vmatprep.subr.bf16.mxu0 %v987
    %1373 = vmatpush1.bf16.msra.mxu0 %v986
    %1374 = vmatprep.subr.bf16.mxu0 %v991
    %1375 = vmatpush1.bf16.msra.mxu0 %v990
    %1376 = vmatprep.subr.bf16.mxu0 %v995
    %1377 = vmatpush1.bf16.msra.mxu0 %v994
    %1378 = vmatprep.subr.bf16.mxu0 %v999
    %1379 = vmatpush1.bf16.msra.mxu0 %v998
    %1380 = vmatprep.subr.bf16.mxu0 %v1003
    %1381 = vmatpush1.bf16.msra.mxu0 %v1002
    %1382 = vmatprep.subr.bf16.mxu0 %v1007
    %1383 = vmatpush1.bf16.msra.mxu0 %v1006
    %1384 = vmatprep.subr.bf16.mxu0 %v1011
    %1385 = vmatpush1.bf16.msra.mxu0 %v1010
    %1386 = vmatprep.subr.bf16.mxu0 %v1015
    %1387 = vmatpush1.bf16.msra.mxu0 %v1014
    %1388 = vmatprep.subr.bf16.mxu0 %v1019
    %1389 = vmatpush1.bf16.msra.mxu0 %v1018
    %1390 = vmatprep.subr.bf16.mxu0 %v1023
    %1391 = vmatpush1.bf16.msra.mxu0 %v1022
    %1392 = vmatprep.subr.bf16.mxu0 %v1027
    %1393 = vmatpush1.bf16.msra.mxu0 %v1026
    %1394 = vmatprep.mubr.bf16.mxu0 %v366
    %1395 = vmatmul.mubr.bf16.gmra.mrb[0].mxu0 %v365
    %v1396 = vpop.f32.mrb[0].mxu0
    %v1397 = vadd.f32 %v326, %v1396
    %v1398 = vpop.f32.mrb[0].mxu0
    %v1399 = vadd.f32 %v330, %v1398
    %v1400 = vpop.f32.mrb[0].mxu0
    %v1401 = vadd.f32 %v326, %v1400
    %v1402 = vpop.f32.mrb[0].mxu0
    %v1403 = vadd.f32 %v330, %v1402
    %1404 = vdwg.mxu0
    %1405 = vmatprep.subr.bf16.mxu0 %v1031
    %1406 = vmatpush1.bf16.msra.mxu0 %v1030
    %1407 = vmatprep.subr.bf16.mxu0 %v1035
    %1408 = vmatpush1.bf16.msra.mxu0 %v1034
    %1409 = vmatprep.subr.bf16.mxu0 %v1039
    %1410 = vmatpush1.bf16.msra.mxu0 %v1038
    %1411 = vmatprep.subr.bf16.mxu0 %v1043
    %1412 = vmatpush1.bf16.msra.mxu0 %v1042
    %1413 = vmatprep.subr.bf16.mxu0 %v1047
    %1414 = vmatpush1.bf16.msra.mxu0 %v1046
    %1415 = vmatprep.subr.bf16.mxu0 %v1051
    %1416 = vmatpush1.bf16.msra.mxu0 %v1050
    %1417 = vmatprep.subr.bf16.mxu0 %v1055
    %1418 = vmatpush1.bf16.msra.mxu0 %v1054
    %1419 = vmatprep.subr.bf16.mxu0 %v1059
    %1420 = vmatpush1.bf16.msra.mxu0 %v1058
    %1421 = vmatprep.subr.bf16.mxu0 %v1063
    %1422 = vmatpush1.bf16.msra.mxu0 %v1062
    %1423 = vmatprep.subr.bf16.mxu0 %v1067
    %1424 = vmatpush1.bf16.msra.mxu0 %v1066
    %1425 = vmatprep.subr.bf16.mxu0 %v1071
    %1426 = vmatpush1.bf16.msra.mxu0 %v1070
    %1427 = vmatprep.subr.bf16.mxu0 %v1075
    %1428 = vmatpush1.bf16.msra.mxu0 %v1074
    %1429 = vmatprep.subr.bf16.mxu0 %v1079
    %1430 = vmatpush1.bf16.msra.mxu0 %v1078
    %1431 = vmatprep.subr.bf16.mxu0 %v1083
    %1432 = vmatpush1.bf16.msra.mxu0 %v1082
    %1433 = vmatprep.subr.bf16.mxu0 %v1087
    %1434 = vmatpush1.bf16.msra.mxu0 %v1086
    %1435 = vmatprep.subr.bf16.mxu0 %v1091
    %1436 = vmatpush1.bf16.msra.mxu0 %v1090
    %1437 = vmatprep.mubr.bf16.mxu0 %v368
    %1438 = vmatmul.mubr.bf16.gmra.mrb[0].mxu0 %v367
    %v1439 = vpop.f32.mrb[0].mxu0
    %v1440 = vadd.f32 %v1397, %v1439
    %v1441 = vpop.f32.mrb[0].mxu0
    %v1442 = vadd.f32 %v1399, %v1441
    %v1443 = vpop.f32.mrb[0].mxu0
    %v1444 = vadd.f32 %v1401, %v1443
    %v1445 = vpop.f32.mrb[0].mxu0
    %v1446 = vadd.f32 %v1403, %v1445
    %1447 = vdwg.mxu0
    %1448 = vmatprep.subr.bf16.mxu0 %v1095
    %1449 = vmatpush1.bf16.msra.mxu0 %v1094
    %1450 = vmatprep.subr.bf16.mxu0 %v1099
    %1451 = vmatpush1.bf16.msra.mxu0 %v1098
    %1452 = vmatprep.subr.bf16.mxu0 %v1103
    %1453 = vmatpush1.bf16.msra.mxu0 %v1102
    %1454 = vmatprep.subr.bf16.mxu0 %v1107
    %1455 = vmatpush1.bf16.msra.mxu0 %v1106
    %1456 = vmatprep.subr.bf16.mxu0 %v1111
    %1457 = vmatpush1.bf16.msra.mxu0 %v1110
    %1458 = vmatprep.subr.bf16.mxu0 %v1115
    %1459 = vmatpush1.bf16.msra.mxu0 %v1114
    %1460 = vmatprep.subr.bf16.mxu0 %v1119
    %1461 = vmatpush1.bf16.msra.mxu0 %v1118
    %1462 = vmatprep.subr.bf16.mxu0 %v1123
    %1463 = vmatpush1.bf16.msra.mxu0 %v1122
    %1464 = vmatprep.subr.bf16.mxu0 %v1127
    %1465 = vmatpush1.bf16.msra.mxu0 %v1126
    %1466 = vmatprep.subr.bf16.mxu0 %v1131
    %1467 = vmatpush1.bf16.msra.mxu0 %v1130
    %1468 = vmatprep.subr.bf16.mxu0 %v1135
    %1469 = vmatpush1.bf16.msra.mxu0 %v1134
    %1470 = vmatprep.subr.bf16.mxu0 %v1139
    %1471 = vmatpush1.bf16.msra.mxu0 %v1138
    %1472 = vmatprep.subr.bf16.mxu0 %v1143
    %1473 = vmatpush1.bf16.msra.mxu0 %v1142
    %1474 = vmatprep.subr.bf16.mxu0 %v1147
    %1475 = vmatpush1.bf16.msra.mxu0 %v1146
    %1476 = vmatprep.subr.bf16.mxu0 %v1151
    %1477 = vmatpush1.bf16.msra.mxu0 %v1150
    %1478 = vmatprep.subr.bf16.mxu0 %v1155
    %1479 = vmatpush1.bf16.msra.mxu0 %v1154
    %1480 = vmatprep.mubr.bf16.mxu0 %v370
    %1481 = vmatmul.mubr.bf16.gmra.mrb[0].mxu0 %v369
    %v1482 = vpop.f32.mrb[0].mxu0
    %v1483 = vadd.f32 %v1440, %v1482
    %v1484 = vpop.f32.mrb[0].mxu0
    %v1485 = vadd.f32 %v1442, %v1484
    %v1486 = vpop.f32.mrb[0].mxu0
    %v1487 = vadd.f32 %v1444, %v1486
    %v1488 = vpop.f32.mrb[0].mxu0
    %v1489 = vadd.f32 %v1446, %v1488
    %1490 = vdwg.mxu0
    %1491 = vmatprep.subr.bf16.mxu0 %v1159
    %1492 = vmatpush1.bf16.msra.mxu0 %v1158
    %1493 = vmatprep.subr.bf16.mxu0 0
    %1494 = vmatpush1.bf16.msra.mxu0 0
    %1495 = vmatprep.subr.bf16.mxu0 0
    %1496 = vmatpush1.bf16.msra.mxu0 0
    %1497 = vmatprep.subr.bf16.mxu0 0
    %1498 = vmatpush1.bf16.msra.mxu0 0
    %1499 = vmatprep.subr.bf16.mxu0 0
    %1500 = vmatpush1.bf16.msra.mxu0 0
    %1501 = vmatprep.subr.bf16.mxu0 0
    %1502 = vmatpush1.bf16.msra.mxu0 0
    %1503 = vmatprep.subr.bf16.mxu0 0
    %1504 = vmatpush1.bf16.msra.mxu0 0
    %1505 = vmatprep.subr.bf16.mxu0 0
    %1506 = vmatpush1.bf16.msra.mxu0 0
    %1507 = vmatprep.subr.bf16.mxu0 0
    %1508 = vmatpush1.bf16.msra.mxu0 0
    %1509 = vmatprep.subr.bf16.mxu0 0
    %1510 = vmatpush1.bf16.msra.mxu0 0
    %1511 = vmatprep.subr.bf16.mxu0 0
    %1512 = vmatpush1.bf16.msra.mxu0 0
    %1513 = vmatprep.subr.bf16.mxu0 0
    %1514 = vmatpush1.bf16.msra.mxu0 0
    %1515 = vmatprep.subr.bf16.mxu0 0
    %1516 = vmatpush1.bf16.msra.mxu0 0
    %1517 = vmatprep.subr.bf16.mxu0 0
    %1518 = vmatpush1.bf16.msra.mxu0 0
    %1519 = vmatprep.subr.bf16.mxu0 0
    %1520 = vmatpush1.bf16.msra.mxu0 0
    %1521 = vmatprep.subr.bf16.mxu0 0
    %1522 = vmatpush1.bf16.msra.mxu0 0
    %1523 = vmatprep.mubr.bf16.mxu0 0
    %1524 = vmatmul.mubr.bf16.gmra.mrb[0].mxu0 %v1360
    %v1525 = vpop.f32.mrb[0].mxu0
    %v1526 = vadd.f32 %v1483, %v1525
    %v1527 = vpop.f32.mrb[0].mxu0
    %v1528 = vadd.f32 %v1485, %v1527
    %v1529 = vpop.f32.mrb[0].mxu0
    %v1530 = vadd.f32 %v1487, %v1529
    %v1531 = vpop.f32.mrb[0].mxu0
    %v1532 = vadd.f32 %v1489, %v1531
    %1533 = vdwg.mxu0
    %1534 = vmatprep.subr.bf16.mxu0 %v969
    %1535 = vmatpush1.bf16.msra.mxu0 %v968
    %1536 = vmatprep.subr.bf16.mxu0 %v973
    %1537 = vmatpush1.bf16.msra.mxu0 %v972
    %1538 = vmatprep.subr.bf16.mxu0 %v977
    %1539 = vmatpush1.bf16.msra.mxu0 %v976
    %1540 = vmatprep.subr.bf16.mxu0 %v981
    %1541 = vmatpush1.bf16.msra.mxu0 %v980
    %1542 = vmatprep.subr.bf16.mxu0 %v985
    %1543 = vmatpush1.bf16.msra.mxu0 %v984
    %1544 = vmatprep.subr.bf16.mxu0 %v989
    %1545 = vmatpush1.bf16.msra.mxu0 %v988
    %1546 = vmatprep.subr.bf16.mxu0 %v993
    %1547 = vmatpush1.bf16.msra.mxu0 %v992
    %1548 = vmatprep.subr.bf16.mxu0 %v997
    %1549 = vmatpush1.bf16.msra.mxu0 %v996
    %1550 = vmatprep.subr.bf16.mxu0 %v1001
    %1551 = vmatpush1.bf16.msra.mxu0 %v1000
    %1552 = vmatprep.subr.bf16.mxu0 %v1005
    %1553 = vmatpush1.bf16.msra.mxu0 %v1004
    %1554 = vmatprep.subr.bf16.mxu0 %v1009
    %1555 = vmatpush1.bf16.msra.mxu0 %v1008
    %1556 = vmatprep.subr.bf16.mxu0 %v1013
    %1557 = vmatpush1.bf16.msra.mxu0 %v1012
    %1558 = vmatprep.subr.bf16.mxu0 %v1017
    %1559 = vmatpush1.bf16.msra.mxu0 %v1016
    %1560 = vmatprep.subr.bf16.mxu0 %v1021
    %1561 = vmatpush1.bf16.msra.mxu0 %v1020
    %1562 = vmatprep.subr.bf16.mxu0 %v1025
    %1563 = vmatpush1.bf16.msra.mxu0 %v1024
    %1564 = vmatprep.subr.bf16.mxu0 %v1029
    %1565 = vmatpush1.bf16.msra.mxu0 %v1028
    %1566 = vmatprep.mubr.bf16.mxu0 %v366
    %1567 = vmatmul.mubr.bf16.gmra.mrb[0].mxu0 %v365
    %v1568 = vpop.f32.mrb[0].mxu0
    %v1569 = vadd.f32 %v334, %v1568
    %v1570 = vpop.f32.mrb[0].mxu0
    %v1571 = vadd.f32 %v338, %v1570
    %v1572 = vpop.f32.mrb[0].mxu0
    %v1573 = vadd.f32 %v334, %v1572
    %v1574 = vpop.f32.mrb[0].mxu0
    %v1575 = vadd.f32 %v338, %v1574
    %1576 = vdwg.mxu0
    %1577 = vmatprep.subr.bf16.mxu0 %v1033
    %1578 = vmatpush1.bf16.msra.mxu0 %v1032
    %1579 = vmatprep.subr.bf16.mxu0 %v1037
    %1580 = vmatpush1.bf16.msra.mxu0 %v1036
    %1581 = vmatprep.subr.bf16.mxu0 %v1041
    %1582 = vmatpush1.bf16.msra.mxu0 %v1040
    %1583 = vmatprep.subr.bf16.mxu0 %v1045
    %1584 = vmatpush1.bf16.msra.mxu0 %v1044
    %1585 = vmatprep.subr.bf16.mxu0 %v1049
    %1586 = vmatpush1.bf16.msra.mxu0 %v1048
    %1587 = vmatprep.subr.bf16.mxu0 %v1053
    %1588 = vmatpush1.bf16.msra.mxu0 %v1052
    %1589 = vmatprep.subr.bf16.mxu0 %v1057
    %1590 = vmatpush1.bf16.msra.mxu0 %v1056
    %1591 = vmatprep.subr.bf16.mxu0 %v1061
    %1592 = vmatpush1.bf16.msra.mxu0 %v1060
    %1593 = vmatprep.subr.bf16.mxu0 %v1065
    %1594 = vmatpush1.bf16.msra.mxu0 %v1064
    %1595 = vmatprep.subr.bf16.mxu0 %v1069
    %1596 = vmatpush1.bf16.msra.mxu0 %v1068
    %1597 = vmatprep.subr.bf16.mxu0 %v1073
    %1598 = vmatpush1.bf16.msra.mxu0 %v1072
    %1599 = vmatprep.subr.bf16.mxu0 %v1077
    %1600 = vmatpush1.bf16.msra.mxu0 %v1076
    %1601 = vmatprep.subr.bf16.mxu0 %v1081
    %1602 = vmatpush1.bf16.msra.mxu0 %v1080
    %1603 = vmatprep.subr.bf16.mxu0 %v1085
    %1604 = vmatpush1.bf16.msra.mxu0 %v1084
    %1605 = vmatprep.subr.bf16.mxu0 %v1089
    %1606 = vmatpush1.bf16.msra.mxu0 %v1088
    %1607 = vmatprep.subr.bf16.mxu0 %v1093
    %1608 = vmatpush1.bf16.msra.mxu0 %v1092
    %1609 = vmatprep.mubr.bf16.mxu0 %v368
    %1610 = vmatmul.mubr.bf16.gmra.mrb[0].mxu0 %v367
    %v1611 = vpop.f32.mrb[0].mxu0
    %v1612 = vadd.f32 %v1569, %v1611
    %v1613 = vpop.f32.mrb[0].mxu0
    %v1614 = vadd.f32 %v1571, %v1613
    %v1615 = vpop.f32.mrb[0].mxu0
    %v1616 = vadd.f32 %v1573, %v1615
    %v1617 = vpop.f32.mrb[0].mxu0
    %v1618 = vadd.f32 %v1575, %v1617
    %1619 = vdwg.mxu0
    %1620 = vmatprep.subr.bf16.mxu0 %v1097
    %1621 = vmatpush1.bf16.msra.mxu0 %v1096
    %1622 = vmatprep.subr.bf16.mxu0 %v1101
    %1623 = vmatpush1.bf16.msra.mxu0 %v1100
    %1624 = vmatprep.subr.bf16.mxu0 %v1105
    %1625 = vmatpush1.bf16.msra.mxu0 %v1104
    %1626 = vmatprep.subr.bf16.mxu0 %v1109
    %1627 = vmatpush1.bf16.msra.mxu0 %v1108
    %1628 = vmatprep.subr.bf16.mxu0 %v1113
    %1629 = vmatpush1.bf16.msra.mxu0 %v1112
    %1630 = vmatprep.subr.bf16.mxu0 %v1117
    %1631 = vmatpush1.bf16.msra.mxu0 %v1116
    %1632 = vmatprep.subr.bf16.mxu0 %v1121
    %1633 = vmatpush1.bf16.msra.mxu0 %v1120
    %1634 = vmatprep.subr.bf16.mxu0 %v1125
    %1635 = vmatpush1.bf16.msra.mxu0 %v1124
    %1636 = vmatprep.subr.bf16.mxu0 %v1129
    %1637 = vmatpush1.bf16.msra.mxu0 %v1128
    %1638 = vmatprep.subr.bf16.mxu0 %v1133
    %1639 = vmatpush1.bf16.msra.mxu0 %v1132
    %1640 = vmatprep.subr.bf16.mxu0 %v1137
    %1641 = vmatpush1.bf16.msra.mxu0 %v1136
    %1642 = vmatprep.subr.bf16.mxu0 %v1141
    %1643 = vmatpush1.bf16.msra.mxu0 %v1140
    %1644 = vmatprep.subr.bf16.mxu0 %v1145
    %1645 = vmatpush1.bf16.msra.mxu0 %v1144
    %1646 = vmatprep.subr.bf16.mxu0 %v1149
    %1647 = vmatpush1.bf16.msra.mxu0 %v1148
    %1648 = vmatprep.subr.bf16.mxu0 %v1153
    %1649 = vmatpush1.bf16.msra.mxu0 %v1152
    %1650 = vmatprep.subr.bf16.mxu0 %v1157
    %1651 = vmatpush1.bf16.msra.mxu0 %v1156
    %1652 = vmatprep.mubr.bf16.mxu0 %v370
    %1653 = vmatmul.mubr.bf16.gmra.mrb[0].mxu0 %v369
    %v1654 = vpop.f32.mrb[0].mxu0
    %v1655 = vadd.f32 %v1612, %v1654
    %v1656 = vpop.f32.mrb[0].mxu0
    %v1657 = vadd.f32 %v1614, %v1656
    %v1658 = vpop.f32.mrb[0].mxu0
    %v1659 = vadd.f32 %v1616, %v1658
    %v1660 = vpop.f32.mrb[0].mxu0
    %v1661 = vadd.f32 %v1618, %v1660
    %1662 = vdwg.mxu0
    %1663 = vmatprep.subr.bf16.mxu0 %v1161
    %1664 = vmatpush1.bf16.msra.mxu0 %v1160
    %1665 = vmatprep.subr.bf16.mxu0 0
    %1666 = vmatpush1.bf16.msra.mxu0 0
    %1667 = vmatprep.subr.bf16.mxu0 0
    %1668 = vmatpush1.bf16.msra.mxu0 0
    %1669 = vmatprep.subr.bf16.mxu0 0
    %1670 = vmatpush1.bf16.msra.mxu0 0
    %1671 = vmatprep.subr.bf16.mxu0 0
    %1672 = vmatpush1.bf16.msra.mxu0 0
    %1673 = vmatprep.subr.bf16.mxu0 0
    %1674 = vmatpush1.bf16.msra.mxu0 0
    %1675 = vmatprep.subr.bf16.mxu0 0
    %1676 = vmatpush1.bf16.msra.mxu0 0
    %1677 = vmatprep.subr.bf16.mxu0 0
    %1678 = vmatpush1.bf16.msra.mxu0 0
    %1679 = vmatprep.subr.bf16.mxu0 0
    %1680 = vmatpush1.bf16.msra.mxu0 0
    %1681 = vmatprep.subr.bf16.mxu0 0
    %1682 = vmatpush1.bf16.msra.mxu0 0
    %1683 = vmatprep.subr.bf16.mxu0 0
    %1684 = vmatpush1.bf16.msra.mxu0 0
    %1685 = vmatprep.subr.bf16.mxu0 0
    %1686 = vmatpush1.bf16.msra.mxu0 0
    %1687 = vmatprep.subr.bf16.mxu0 0
    %1688 = vmatpush1.bf16.msra.mxu0 0
    %1689 = vmatprep.subr.bf16.mxu0 0
    %1690 = vmatpush1.bf16.msra.mxu0 0
    %1691 = vmatprep.subr.bf16.mxu0 0
    %1692 = vmatpush1.bf16.msra.mxu0 0
    %1693 = vmatprep.subr.bf16.mxu0 0
    %1694 = vmatpush1.bf16.msra.mxu0 0
    %1695 = vmatprep.mubr.bf16.mxu0 0
    %1696 = vmatmul.mubr.bf16.gmra.mrb[0].mxu0 %v1360
    %v1697 = vpop.f32.mrb[0].mxu0
    %v1698 = vadd.f32 %v1655, %v1697
    %v1699 = vpop.f32.mrb[0].mxu0
    %v1700 = vadd.f32 %v1657, %v1699
    %v1701 = vpop.f32.mrb[0].mxu0
    %v1702 = vadd.f32 %v1659, %v1701
    %v1703 = vpop.f32.mrb[0].mxu0
    %v1704 = vadd.f32 %v1661, %v1703
    %1705 = vdwg.mxu0
    %v1706 = vmax.f32 %v1526, 0.0
    %v1707 = vmax.f32 %v1528, 0.0
    %v1708 = vmax.f32 %v1698, 0.0
    %v1709 = vmax.f32 %v1700, 0.0
    %v1710 = vmax.f32 %v1530, 0.0
    %v1711 = vmax.f32 %v1532, 0.0
    %v1712 = vmax.f32 %v1702, 0.0
    %v1713 = vmax.f32 %v1704, 0.0
    %v1714 = vpack.c.bf16 %v1710, %v1706
    %v1715 = vpack.c.bf16 %v1711, %v1707
    %v1716 = vpack.c.bf16 %v1712, %v1708
    %v1717 = vpack.c.bf16 %v1713, %v1709
    %v1718 = vld [vmem:[#allocation8] sm:$0xff]
    %v1719 = vld [vmem:[#allocation8 + $0x8] sm:$0xff]
    %v1720 = vld [vmem:[#allocation8 + $0x10] sm:$0xff]
    %v1721 = vld [vmem:[#allocation8 + $0x18] sm:$0xff]
    %v1722 = vld [vmem:[#allocation8 + $0x20] sm:$0xff]
    %v1723 = vld [vmem:[#allocation8 + $0x28] sm:$0xff]
    %v1724 = vld [vmem:[#allocation8 + $0x30] sm:$0xff]
    %v1725 = vld [vmem:[#allocation8 + $0x38] sm:$0xff]
    %v1726 = vld [vmem:[#allocation8 + $0x40] sm:$0xff]
    %v1727 = vld [vmem:[#allocation8 + $0x48] sm:$0xff]
    %v1728 = vld [vmem:[#allocation8 + $0x50] sm:$0xff]
    %v1729 = vld [vmem:[#allocation8 + $0x58] sm:$0xff]
    %v1730 = vld [vmem:[#allocation8 + $0x60] sm:$0xff]
    %v1731 = vld [vmem:[#allocation8 + $0x68] sm:$0xff]
    %v1732 = vld [vmem:[#allocation8 + $0x70] sm:$0xff]
    %v1733 = vld [vmem:[#allocation8 + $0x78] sm:$0xff]
    %v1734 = vld [vmem:[#allocation8 + $0x80] sm:$0xff]
    %v1735 = vld [vmem:[#allocation8 + $0x88] sm:$0xff]
    %v1736 = vld [vmem:[#allocation8 + $0x90] sm:$0xff]
    %v1737 = vld [vmem:[#allocation8 + $0x98] sm:$0xff]
    %v1738 = vld [vmem:[#allocation8 + $0xa0] sm:$0xff]
    %v1739 = vld [vmem:[#allocation8 + $0xa8] sm:$0xff]
    %v1740 = vld [vmem:[#allocation8 + $0xb0] sm:$0xff]
    %v1741 = vld [vmem:[#allocation8 + $0xb8] sm:$0xff]
    %v1742 = vld [vmem:[#allocation8 + $0xc0] sm:$0xff]
    %v1743 = vld [vmem:[#allocation8 + $0xc8] sm:$0xff]
    %v1744 = vld [vmem:[#allocation8 + $0xd0] sm:$0xff]
    %v1745 = vld [vmem:[#allocation8 + $0xd8] sm:$0xff]
    %v1746 = vld [vmem:[#allocation8 + $0xe0] sm:$0xff]
    %v1747 = vld [vmem:[#allocation8 + $0xe8] sm:$0xff]
    %v1748 = vld [vmem:[#allocation8 + $0xf0] sm:$0xff]
    %v1749 = vld [vmem:[#allocation8 + $0xf8] sm:$0xff]
    %v1750 = vld [vmem:[#allocation8 + $0x100] sm:$0xff]
    %v1751 = vld [vmem:[#allocation8 + $0x108] sm:$0xff]
    %v1752 = vld [vmem:[#allocation8 + $0x110] sm:$0xff]
    %v1753 = vld [vmem:[#allocation8 + $0x118] sm:$0xff]
    %v1754 = vld [vmem:[#allocation8 + $0x120] sm:$0xff]
    %v1755 = vld [vmem:[#allocation8 + $0x128] sm:$0xff]
    %v1756 = vld [vmem:[#allocation8 + $0x130] sm:$0xff]
    %v1757 = vld [vmem:[#allocation8 + $0x138] sm:$0xff]
    %v1758 = vld [vmem:[#allocation8 + $0x140] sm:$0xff]
    %v1759 = vld [vmem:[#allocation8 + $0x148] sm:$0xff]
    %v1760 = vld [vmem:[#allocation8 + $0x150] sm:$0xff]
    %v1761 = vld [vmem:[#allocation8 + $0x158] sm:$0xff]
    %v1762 = vld [vmem:[#allocation8 + $0x160] sm:$0xff]
    %v1763 = vld [vmem:[#allocation8 + $0x168] sm:$0xff]
    %v1764 = vld [vmem:[#allocation8 + $0x170] sm:$0xff]
    %v1765 = vld [vmem:[#allocation8 + $0x178] sm:$0xff]
    %v1766 = vld [vmem:[#allocation8 + $0x180] sm:$0xff]
    %v1767 = vld [vmem:[#allocation8 + $0x188] sm:$0xff]
    %v1768 = vld [vmem:[#allocation8 + $0x190] sm:$0xff]
    %v1769 = vld [vmem:[#allocation8 + $0x198] sm:$0xff]
    %v1770 = vld [vmem:[#allocation8 + $0x1a0] sm:$0xff]
    %v1771 = vld [vmem:[#allocation8 + $0x1a8] sm:$0xff]
    %v1772 = vld [vmem:[#allocation8 + $0x1b0] sm:$0xff]
    %v1773 = vld [vmem:[#allocation8 + $0x1b8] sm:$0xff]
    %v1774 = vld [vmem:[#allocation8 + $0x1c0] sm:$0xff]
    %v1775 = vld [vmem:[#allocation8 + $0x1c8] sm:$0xff]
    %v1776 = vld [vmem:[#allocation8 + $0x1d0] sm:$0xff]
    %v1777 = vld [vmem:[#allocation8 + $0x1d8] sm:$0xff]
    %v1778 = vld [vmem:[#allocation8 + $0x1e0] sm:$0xff]
    %v1779 = vld [vmem:[#allocation8 + $0x1e8] sm:$0xff]
    %v1780 = vld [vmem:[#allocation8 + $0x1f0] sm:$0xff]
    %v1781 = vld [vmem:[#allocation8 + $0x1f8] sm:$0xff]
    %v1782 = vld [vmem:[#allocation8 + $0x200] sm:$0xff]
    %v1783 = vld [vmem:[#allocation8 + $0x208] sm:$0xff]
    %v1784 = vld [vmem:[#allocation8 + $0x210] sm:$0xff]
    %v1785 = vld [vmem:[#allocation8 + $0x218] sm:$0xff]
    %v1786 = vld [vmem:[#allocation8 + $0x220] sm:$0xff]
    %v1787 = vld [vmem:[#allocation8 + $0x228] sm:$0xff]
    %v1788 = vld [vmem:[#allocation8 + $0x230] sm:$0xff]
    %v1789 = vld [vmem:[#allocation8 + $0x238] sm:$0xff]
    %v1790 = vld [vmem:[#allocation8 + $0x240] sm:$0xff]
    %v1791 = vld [vmem:[#allocation8 + $0x248] sm:$0xff]
    %v1792 = vld [vmem:[#allocation8 + $0x250] sm:$0xff]
    %v1793 = vld [vmem:[#allocation8 + $0x258] sm:$0xff]
    %v1794 = vld [vmem:[#allocation8 + $0x260] sm:$0xff]
    %v1795 = vld [vmem:[#allocation8 + $0x268] sm:$0xff]
    %v1796 = vld [vmem:[#allocation8 + $0x270] sm:$0xff]
    %v1797 = vld [vmem:[#allocation8 + $0x278] sm:$0xff]
    %v1798 = vld [vmem:[#allocation8 + $0x280] sm:$0xff]
    %v1799 = vld [vmem:[#allocation8 + $0x288] sm:$0xff]
    %v1800 = vld [vmem:[#allocation8 + $0x290] sm:$0xff]
    %v1801 = vld [vmem:[#allocation8 + $0x298] sm:$0xff]
    %v1802 = vld [vmem:[#allocation8 + $0x2a0] sm:$0xff]
    %v1803 = vld [vmem:[#allocation8 + $0x2a8] sm:$0xff]
    %v1804 = vld [vmem:[#allocation8 + $0x2b0] sm:$0xff]
    %v1805 = vld [vmem:[#allocation8 + $0x2b8] sm:$0xff]
    %v1806 = vld [vmem:[#allocation8 + $0x2c0] sm:$0xff]
    %v1807 = vld [vmem:[#allocation8 + $0x2c8] sm:$0xff]
    %v1808 = vld [vmem:[#allocation8 + $0x2d0] sm:$0xff]
    %v1809 = vld [vmem:[#allocation8 + $0x2d8] sm:$0xff]
    %v1810 = vld [vmem:[#allocation8 + $0x2e0] sm:$0xff]
    %v1811 = vld [vmem:[#allocation8 + $0x2e8] sm:$0xff]
    %v1812 = vld [vmem:[#allocation8 + $0x2f0] sm:$0xff]
    %v1813 = vld [vmem:[#allocation8 + $0x2f8] sm:$0xff]
    %v1814 = vld [vmem:[#allocation8 + $0x300] sm:$0xff]
    %v1815 = vld [vmem:[#allocation8 + $0x308] sm:$0xff]
    %v1816 = vld [vmem:[#allocation8 + $0x310] sm:$0xff]
    %v1817 = vld [vmem:[#allocation8 + $0x318] sm:$0xff]
    %v1818 = vld [vmem:[#allocation8 + $0x320] sm:$0xff]
    %v1819 = vld [vmem:[#allocation8 + $0x328] sm:$0xff]
    %v1820 = vld [vmem:[#allocation8 + $0x330] sm:$0xff]
    %v1821 = vld [vmem:[#allocation8 + $0x338] sm:$0xff]
    %v1822 = vld [vmem:[#allocation8 + $0x340] sm:$0xff]
    %v1823 = vld [vmem:[#allocation8 + $0x348] sm:$0xff]
    %v1824 = vld [vmem:[#allocation8 + $0x350] sm:$0xff]
    %v1825 = vld [vmem:[#allocation8 + $0x358] sm:$0xff]
    %v1826 = vld [vmem:[#allocation8 + $0x360] sm:$0xff]
    %v1827 = vld [vmem:[#allocation8 + $0x368] sm:$0xff]
    %v1828 = vld [vmem:[#allocation8 + $0x370] sm:$0xff]
    %v1829 = vld [vmem:[#allocation8 + $0x378] sm:$0xff]
    %v1830 = vld [vmem:[#allocation8 + $0x380] sm:$0xff]
    %v1831 = vld [vmem:[#allocation8 + $0x388] sm:$0xff]
    %v1832 = vld [vmem:[#allocation8 + $0x390] sm:$0xff]
    %v1833 = vld [vmem:[#allocation8 + $0x398] sm:$0xff]
    %v1834 = vld [vmem:[#allocation8 + $0x3a0] sm:$0xff]
    %v1835 = vld [vmem:[#allocation8 + $0x3a8] sm:$0xff]
    %v1836 = vld [vmem:[#allocation8 + $0x3b0] sm:$0xff]
    %v1837 = vld [vmem:[#allocation8 + $0x3b8] sm:$0xff]
    %v1838 = vld [vmem:[#allocation8 + $0x3c0] sm:$0xff]
    %v1839 = vld [vmem:[#allocation8 + $0x3c8] sm:$0xff]
    %v1840 = vld [vmem:[#allocation8 + $0x3d0] sm:$0xff]
    %v1841 = vld [vmem:[#allocation8 + $0x3d8] sm:$0xff]
    %v1842 = vld [vmem:[#allocation8 + $0x3e0] sm:$0xff]
    %v1843 = vld [vmem:[#allocation8 + $0x3e8] sm:$0xff]
    %v1844 = vld [vmem:[#allocation8 + $0x3f0] sm:$0xff]
    %v1845 = vld [vmem:[#allocation8 + $0x3f8] sm:$0xff]
    %v1846 = vld [vmem:[#allocation10] sm:$0xf]
    %v1848 = vlaneseq
    %v1849 = vshrl.u32 %v1848, 7
    %v1850 = vsub.s32 0, %v1849
    %v1851 = vrot.slane %v1846, %v1850
    %v1852 = vlaneseq
    %v1853 = vshrl.u32 %v1852, 7
    %v1854 = vsub.s32 1, %v1853
    %v1855 = vrot.slane %v1846, %v1854
    %v1856 = vlaneseq
    %v1857 = vshrl.u32 %v1856, 7
    %v1858 = vsub.s32 2, %v1857
    %v1859 = vrot.slane %v1846, %v1858
    %v1860 = vlaneseq
    %v1861 = vshrl.u32 %v1860, 7
    %v1862 = vsub.s32 3, %v1861
    %v1863 = vrot.slane %v1846, %v1862
    %v1996 = vunpack.c.l.b16 %v1718
    %v1997 = vunpack.c.h.b16 %v1718
    %v1998 = vunpack.c.l.b16 %v1719
    %v1999 = vunpack.c.h.b16 %v1719
    %v2000 = vunpack.c.l.b16 %v1720
    %v2001 = vunpack.c.h.b16 %v1720
    %v2002 = vunpack.c.l.b16 %v1721
    %v2003 = vunpack.c.h.b16 %v1721
    %v2004 = vunpack.c.l.b16 %v1722
    %v2005 = vunpack.c.h.b16 %v1722
    %v2006 = vunpack.c.l.b16 %v1723
    %v2007 = vunpack.c.h.b16 %v1723
    %v2008 = vunpack.c.l.b16 %v1724
    %v2009 = vunpack.c.h.b16 %v1724
    %v2010 = vunpack.c.l.b16 %v1725
    %v2011 = vunpack.c.h.b16 %v1725
    %v2012 = vunpack.c.l.b16 %v1726
    %v2013 = vunpack.c.h.b16 %v1726
    %v2014 = vunpack.c.l.b16 %v1727
    %v2015 = vunpack.c.h.b16 %v1727
    %v2016 = vunpack.c.l.b16 %v1728
    %v2017 = vunpack.c.h.b16 %v1728
    %v2018 = vunpack.c.l.b16 %v1729
    %v2019 = vunpack.c.h.b16 %v1729
    %v2020 = vunpack.c.l.b16 %v1730
    %v2021 = vunpack.c.h.b16 %v1730
    %v2022 = vunpack.c.l.b16 %v1731
    %v2023 = vunpack.c.h.b16 %v1731
    %v2024 = vunpack.c.l.b16 %v1732
    %v2025 = vunpack.c.h.b16 %v1732
    %v2026 = vunpack.c.l.b16 %v1733
    %v2027 = vunpack.c.h.b16 %v1733
    %v2028 = vunpack.c.l.b16 %v1734
    %v2029 = vunpack.c.h.b16 %v1734
    %v2030 = vunpack.c.l.b16 %v1735
    %v2031 = vunpack.c.h.b16 %v1735
    %v2032 = vunpack.c.l.b16 %v1736
    %v2033 = vunpack.c.h.b16 %v1736
    %v2034 = vunpack.c.l.b16 %v1737
    %v2035 = vunpack.c.h.b16 %v1737
    %v2036 = vunpack.c.l.b16 %v1738
    %v2037 = vunpack.c.h.b16 %v1738
    %v2038 = vunpack.c.l.b16 %v1739
    %v2039 = vunpack.c.h.b16 %v1739
    %v2040 = vunpack.c.l.b16 %v1740
    %v2041 = vunpack.c.h.b16 %v1740
    %v2042 = vunpack.c.l.b16 %v1741
    %v2043 = vunpack.c.h.b16 %v1741
    %v2044 = vunpack.c.l.b16 %v1742
    %v2045 = vunpack.c.h.b16 %v1742
    %v2046 = vunpack.c.l.b16 %v1743
    %v2047 = vunpack.c.h.b16 %v1743
    %v2048 = vunpack.c.l.b16 %v1744
    %v2049 = vunpack.c.h.b16 %v1744
    %v2050 = vunpack.c.l.b16 %v1745
    %v2051 = vunpack.c.h.b16 %v1745
    %v2052 = vunpack.c.l.b16 %v1746
    %v2053 = vunpack.c.h.b16 %v1746
    %v2054 = vunpack.c.l.b16 %v1747
    %v2055 = vunpack.c.h.b16 %v1747
    %v2056 = vunpack.c.l.b16 %v1748
    %v2057 = vunpack.c.h.b16 %v1748
    %v2058 = vunpack.c.l.b16 %v1749
    %v2059 = vunpack.c.h.b16 %v1749
    %v2060 = vunpack.c.l.b16 %v1750
    %v2061 = vunpack.c.h.b16 %v1750
    %v2062 = vunpack.c.l.b16 %v1751
    %v2063 = vunpack.c.h.b16 %v1751
    %v2064 = vunpack.c.l.b16 %v1752
    %v2065 = vunpack.c.h.b16 %v1752
    %v2066 = vunpack.c.l.b16 %v1753
    %v2067 = vunpack.c.h.b16 %v1753
    %v2068 = vunpack.c.l.b16 %v1754
    %v2069 = vunpack.c.h.b16 %v1754
    %v2070 = vunpack.c.l.b16 %v1755
    %v2071 = vunpack.c.h.b16 %v1755
    %v2072 = vunpack.c.l.b16 %v1756
    %v2073 = vunpack.c.h.b16 %v1756
    %v2074 = vunpack.c.l.b16 %v1757
    %v2075 = vunpack.c.h.b16 %v1757
    %v2076 = vunpack.c.l.b16 %v1758
    %v2077 = vunpack.c.h.b16 %v1758
    %v2078 = vunpack.c.l.b16 %v1759
    %v2079 = vunpack.c.h.b16 %v1759
    %v2080 = vunpack.c.l.b16 %v1760
    %v2081 = vunpack.c.h.b16 %v1760
    %v2082 = vunpack.c.l.b16 %v1761
    %v2083 = vunpack.c.h.b16 %v1761
    %v2084 = vunpack.c.l.b16 %v1762
    %v2085 = vunpack.c.h.b16 %v1762
    %v2086 = vunpack.c.l.b16 %v1763
    %v2087 = vunpack.c.h.b16 %v1763
    %v2088 = vunpack.c.l.b16 %v1764
    %v2089 = vunpack.c.h.b16 %v1764
    %v2090 = vunpack.c.l.b16 %v1765
    %v2091 = vunpack.c.h.b16 %v1765
    %v2092 = vunpack.c.l.b16 %v1766
    %v2093 = vunpack.c.h.b16 %v1766
    %v2094 = vunpack.c.l.b16 %v1767
    %v2095 = vunpack.c.h.b16 %v1767
    %v2096 = vunpack.c.l.b16 %v1768
    %v2097 = vunpack.c.h.b16 %v1768
    %v2098 = vunpack.c.l.b16 %v1769
    %v2099 = vunpack.c.h.b16 %v1769
    %v2100 = vunpack.c.l.b16 %v1770
    %v2101 = vunpack.c.h.b16 %v1770
    %v2102 = vunpack.c.l.b16 %v1771
    %v2103 = vunpack.c.h.b16 %v1771
    %v2104 = vunpack.c.l.b16 %v1772
    %v2105 = vunpack.c.h.b16 %v1772
    %v2106 = vunpack.c.l.b16 %v1773
    %v2107 = vunpack.c.h.b16 %v1773
    %v2108 = vunpack.c.l.b16 %v1774
    %v2109 = vunpack.c.h.b16 %v1774
    %v2110 = vunpack.c.l.b16 %v1775
    %v2111 = vunpack.c.h.b16 %v1775
    %v2112 = vunpack.c.l.b16 %v1776
    %v2113 = vunpack.c.h.b16 %v1776
    %v2114 = vunpack.c.l.b16 %v1777
    %v2115 = vunpack.c.h.b16 %v1777
    %v2116 = vunpack.c.l.b16 %v1778
    %v2117 = vunpack.c.h.b16 %v1778
    %v2118 = vunpack.c.l.b16 %v1779
    %v2119 = vunpack.c.h.b16 %v1779
    %v2120 = vunpack.c.l.b16 %v1780
    %v2121 = vunpack.c.h.b16 %v1780
    %v2122 = vunpack.c.l.b16 %v1781
    %v2123 = vunpack.c.h.b16 %v1781
    %v2124 = vunpack.c.l.b16 %v1782
    %v2125 = vunpack.c.h.b16 %v1782
    %v2126 = vunpack.c.l.b16 %v1783
    %v2127 = vunpack.c.h.b16 %v1783
    %v2128 = vunpack.c.l.b16 %v1784
    %v2129 = vunpack.c.h.b16 %v1784
    %v2130 = vunpack.c.l.b16 %v1785
    %v2131 = vunpack.c.h.b16 %v1785
    %v2132 = vunpack.c.l.b16 %v1786
    %v2133 = vunpack.c.h.b16 %v1786
    %v2134 = vunpack.c.l.b16 %v1787
    %v2135 = vunpack.c.h.b16 %v1787
    %v2136 = vunpack.c.l.b16 %v1788
    %v2137 = vunpack.c.h.b16 %v1788
    %v2138 = vunpack.c.l.b16 %v1789
    %v2139 = vunpack.c.h.b16 %v1789
    %v2140 = vunpack.c.l.b16 %v1790
    %v2141 = vunpack.c.h.b16 %v1790
    %v2142 = vunpack.c.l.b16 %v1791
    %v2143 = vunpack.c.h.b16 %v1791
    %v2144 = vunpack.c.l.b16 %v1792
    %v2145 = vunpack.c.h.b16 %v1792
    %v2146 = vunpack.c.l.b16 %v1793
    %v2147 = vunpack.c.h.b16 %v1793
    %v2148 = vunpack.c.l.b16 %v1794
    %v2149 = vunpack.c.h.b16 %v1794
    %v2150 = vunpack.c.l.b16 %v1795
    %v2151 = vunpack.c.h.b16 %v1795
    %v2152 = vunpack.c.l.b16 %v1796
    %v2153 = vunpack.c.h.b16 %v1796
    %v2154 = vunpack.c.l.b16 %v1797
    %v2155 = vunpack.c.h.b16 %v1797
    %v2156 = vunpack.c.l.b16 %v1798
    %v2157 = vunpack.c.h.b16 %v1798
    %v2158 = vunpack.c.l.b16 %v1799
    %v2159 = vunpack.c.h.b16 %v1799
    %v2160 = vunpack.c.l.b16 %v1800
    %v2161 = vunpack.c.h.b16 %v1800
    %v2162 = vunpack.c.l.b16 %v1801
    %v2163 = vunpack.c.h.b16 %v1801
    %v2164 = vunpack.c.l.b16 %v1802
    %v2165 = vunpack.c.h.b16 %v1802
    %v2166 = vunpack.c.l.b16 %v1803
    %v2167 = vunpack.c.h.b16 %v1803
    %v2168 = vunpack.c.l.b16 %v1804
    %v2169 = vunpack.c.h.b16 %v1804
    %v2170 = vunpack.c.l.b16 %v1805
    %v2171 = vunpack.c.h.b16 %v1805
    %v2172 = vunpack.c.l.b16 %v1806
    %v2173 = vunpack.c.h.b16 %v1806
    %v2174 = vunpack.c.l.b16 %v1807
    %v2175 = vunpack.c.h.b16 %v1807
    %v2176 = vunpack.c.l.b16 %v1808
    %v2177 = vunpack.c.h.b16 %v1808
    %v2178 = vunpack.c.l.b16 %v1809
    %v2179 = vunpack.c.h.b16 %v1809
    %v2180 = vunpack.c.l.b16 %v1810
    %v2181 = vunpack.c.h.b16 %v1810
    %v2182 = vunpack.c.l.b16 %v1811
    %v2183 = vunpack.c.h.b16 %v1811
    %v2184 = vunpack.c.l.b16 %v1812
    %v2185 = vunpack.c.h.b16 %v1812
    %v2186 = vunpack.c.l.b16 %v1813
    %v2187 = vunpack.c.h.b16 %v1813
    %v2188 = vunpack.c.l.b16 %v1814
    %v2189 = vunpack.c.h.b16 %v1814
    %v2190 = vunpack.c.l.b16 %v1815
    %v2191 = vunpack.c.h.b16 %v1815
    %v2192 = vunpack.c.l.b16 %v1816
    %v2193 = vunpack.c.h.b16 %v1816
    %v2194 = vunpack.c.l.b16 %v1817
    %v2195 = vunpack.c.h.b16 %v1817
    %v2196 = vunpack.c.l.b16 %v1818
    %v2197 = vunpack.c.h.b16 %v1818
    %v2198 = vunpack.c.l.b16 %v1819
    %v2199 = vunpack.c.h.b16 %v1819
    %v2200 = vunpack.c.l.b16 %v1820
    %v2201 = vunpack.c.h.b16 %v1820
    %v2202 = vunpack.c.l.b16 %v1821
    %v2203 = vunpack.c.h.b16 %v1821
    %v2204 = vunpack.c.l.b16 %v1822
    %v2205 = vunpack.c.h.b16 %v1822
    %v2206 = vunpack.c.l.b16 %v1823
    %v2207 = vunpack.c.h.b16 %v1823
    %v2208 = vunpack.c.l.b16 %v1824
    %v2209 = vunpack.c.h.b16 %v1824
    %v2210 = vunpack.c.l.b16 %v1825
    %v2211 = vunpack.c.h.b16 %v1825
    %v2212 = vunpack.c.l.b16 %v1826
    %v2213 = vunpack.c.h.b16 %v1826
    %v2214 = vunpack.c.l.b16 %v1827
    %v2215 = vunpack.c.h.b16 %v1827
    %v2216 = vunpack.c.l.b16 %v1828
    %v2217 = vunpack.c.h.b16 %v1828
    %v2218 = vunpack.c.l.b16 %v1829
    %v2219 = vunpack.c.h.b16 %v1829
    %v2220 = vunpack.c.l.b16 %v1830
    %v2221 = vunpack.c.h.b16 %v1830
    %v2222 = vunpack.c.l.b16 %v1831
    %v2223 = vunpack.c.h.b16 %v1831
    %v2224 = vunpack.c.l.b16 %v1832
    %v2225 = vunpack.c.h.b16 %v1832
    %v2226 = vunpack.c.l.b16 %v1833
    %v2227 = vunpack.c.h.b16 %v1833
    %v2228 = vunpack.c.l.b16 %v1834
    %v2229 = vunpack.c.h.b16 %v1834
    %v2230 = vunpack.c.l.b16 %v1835
    %v2231 = vunpack.c.h.b16 %v1835
    %v2232 = vunpack.c.l.b16 %v1836
    %v2233 = vunpack.c.h.b16 %v1836
    %v2234 = vunpack.c.l.b16 %v1837
    %v2235 = vunpack.c.h.b16 %v1837
    %v2236 = vunpack.c.l.b16 %v1838
    %v2237 = vunpack.c.h.b16 %v1838
    %v2238 = vunpack.c.l.b16 %v1839
    %v2239 = vunpack.c.h.b16 %v1839
    %v2240 = vunpack.c.l.b16 %v1840
    %v2241 = vunpack.c.h.b16 %v1840
    %v2242 = vunpack.c.l.b16 %v1841
    %v2243 = vunpack.c.h.b16 %v1841
    %v2244 = vunpack.c.l.b16 %v1842
    %v2245 = vunpack.c.h.b16 %v1842
    %v2246 = vunpack.c.l.b16 %v1843
    %v2247 = vunpack.c.h.b16 %v1843
    %v2248 = vunpack.c.l.b16 %v1844
    %v2249 = vunpack.c.h.b16 %v1844
    %v2250 = vunpack.c.l.b16 %v1845
    %v2251 = vunpack.c.h.b16 %v1845
    %v2252 = vpack.c.b16 %v2000, %v1996
    %v2253 = vpack.c.b16 %v2001, %v1997
    %v2254 = vpack.c.b16 %v2002, %v1998
    %v2255 = vpack.c.b16 %v2003, %v1999
    %v2256 = vpack.c.b16 %v2008, %v2004
    %v2257 = vpack.c.b16 %v2009, %v2005
    %v2258 = vpack.c.b16 %v2010, %v2006
    %v2259 = vpack.c.b16 %v2011, %v2007
    %v2260 = vpack.c.b16 %v2016, %v2012
    %v2261 = vpack.c.b16 %v2017, %v2013
    %v2262 = vpack.c.b16 %v2018, %v2014
    %v2263 = vpack.c.b16 %v2019, %v2015
    %v2264 = vpack.c.b16 %v2024, %v2020
    %v2265 = vpack.c.b16 %v2025, %v2021
    %v2266 = vpack.c.b16 %v2026, %v2022
    %v2267 = vpack.c.b16 %v2027, %v2023
    %v2268 = vpack.c.b16 %v2032, %v2028
    %v2269 = vpack.c.b16 %v2033, %v2029
    %v2270 = vpack.c.b16 %v2034, %v2030
    %v2271 = vpack.c.b16 %v2035, %v2031
    %v2272 = vpack.c.b16 %v2040, %v2036
    %v2273 = vpack.c.b16 %v2041, %v2037
    %v2274 = vpack.c.b16 %v2042, %v2038
    %v2275 = vpack.c.b16 %v2043, %v2039
    %v2276 = vpack.c.b16 %v2048, %v2044
    %v2277 = vpack.c.b16 %v2049, %v2045
    %v2278 = vpack.c.b16 %v2050, %v2046
    %v2279 = vpack.c.b16 %v2051, %v2047
    %v2280 = vpack.c.b16 %v2056, %v2052
    %v2281 = vpack.c.b16 %v2057, %v2053
    %v2282 = vpack.c.b16 %v2058, %v2054
    %v2283 = vpack.c.b16 %v2059, %v2055
    %v2284 = vpack.c.b16 %v2064, %v2060
    %v2285 = vpack.c.b16 %v2065, %v2061
    %v2286 = vpack.c.b16 %v2066, %v2062
    %v2287 = vpack.c.b16 %v2067, %v2063
    %v2288 = vpack.c.b16 %v2072, %v2068
    %v2289 = vpack.c.b16 %v2073, %v2069
    %v2290 = vpack.c.b16 %v2074, %v2070
    %v2291 = vpack.c.b16 %v2075, %v2071
    %v2292 = vpack.c.b16 %v2080, %v2076
    %v2293 = vpack.c.b16 %v2081, %v2077
    %v2294 = vpack.c.b16 %v2082, %v2078
    %v2295 = vpack.c.b16 %v2083, %v2079
    %v2296 = vpack.c.b16 %v2088, %v2084
    %v2297 = vpack.c.b16 %v2089, %v2085
    %v2298 = vpack.c.b16 %v2090, %v2086
    %v2299 = vpack.c.b16 %v2091, %v2087
    %v2300 = vpack.c.b16 %v2096, %v2092
    %v2301 = vpack.c.b16 %v2097, %v2093
    %v2302 = vpack.c.b16 %v2098, %v2094
    %v2303 = vpack.c.b16 %v2099, %v2095
    %v2304 = vpack.c.b16 %v2104, %v2100
    %v2305 = vpack.c.b16 %v2105, %v2101
    %v2306 = vpack.c.b16 %v2106, %v2102
    %v2307 = vpack.c.b16 %v2107, %v2103
    %v2308 = vpack.c.b16 %v2112, %v2108
    %v2309 = vpack.c.b16 %v2113, %v2109
    %v2310 = vpack.c.b16 %v2114, %v2110
    %v2311 = vpack.c.b16 %v2115, %v2111
    %v2312 = vpack.c.b16 %v2120, %v2116
    %v2313 = vpack.c.b16 %v2121, %v2117
    %v2314 = vpack.c.b16 %v2122, %v2118
    %v2315 = vpack.c.b16 %v2123, %v2119
    %v2316 = vpack.c.b16 %v2128, %v2124
    %v2317 = vpack.c.b16 %v2129, %v2125
    %v2318 = vpack.c.b16 %v2130, %v2126
    %v2319 = vpack.c.b16 %v2131, %v2127
    %v2320 = vpack.c.b16 %v2136, %v2132
    %v2321 = vpack.c.b16 %v2137, %v2133
    %v2322 = vpack.c.b16 %v2138, %v2134
    %v2323 = vpack.c.b16 %v2139, %v2135
    %v2324 = vpack.c.b16 %v2144, %v2140
    %v2325 = vpack.c.b16 %v2145, %v2141
    %v2326 = vpack.c.b16 %v2146, %v2142
    %v2327 = vpack.c.b16 %v2147, %v2143
    %v2328 = vpack.c.b16 %v2152, %v2148
    %v2329 = vpack.c.b16 %v2153, %v2149
    %v2330 = vpack.c.b16 %v2154, %v2150
    %v2331 = vpack.c.b16 %v2155, %v2151
    %v2332 = vpack.c.b16 %v2160, %v2156
    %v2333 = vpack.c.b16 %v2161, %v2157
    %v2334 = vpack.c.b16 %v2162, %v2158
    %v2335 = vpack.c.b16 %v2163, %v2159
    %v2336 = vpack.c.b16 %v2168, %v2164
    %v2337 = vpack.c.b16 %v2169, %v2165
    %v2338 = vpack.c.b16 %v2170, %v2166
    %v2339 = vpack.c.b16 %v2171, %v2167
    %v2340 = vpack.c.b16 %v2176, %v2172
    %v2341 = vpack.c.b16 %v2177, %v2173
    %v2342 = vpack.c.b16 %v2178, %v2174
    %v2343 = vpack.c.b16 %v2179, %v2175
    %v2344 = vpack.c.b16 %v2184, %v2180
    %v2345 = vpack.c.b16 %v2185, %v2181
    %v2346 = vpack.c.b16 %v2186, %v2182
    %v2347 = vpack.c.b16 %v2187, %v2183
    %v2348 = vpack.c.b16 %v2192, %v2188
    %v2349 = vpack.c.b16 %v2193, %v2189
    %v2350 = vpack.c.b16 %v2194, %v2190
    %v2351 = vpack.c.b16 %v2195, %v2191
    %v2352 = vpack.c.b16 %v2200, %v2196
    %v2353 = vpack.c.b16 %v2201, %v2197
    %v2354 = vpack.c.b16 %v2202, %v2198
    %v2355 = vpack.c.b16 %v2203, %v2199
    %v2356 = vpack.c.b16 %v2208, %v2204
    %v2357 = vpack.c.b16 %v2209, %v2205
    %v2358 = vpack.c.b16 %v2210, %v2206
    %v2359 = vpack.c.b16 %v2211, %v2207
    %v2360 = vpack.c.b16 %v2216, %v2212
    %v2361 = vpack.c.b16 %v2217, %v2213
    %v2362 = vpack.c.b16 %v2218, %v2214
    %v2363 = vpack.c.b16 %v2219, %v2215
    %v2364 = vpack.c.b16 %v2224, %v2220
    %v2365 = vpack.c.b16 %v2225, %v2221
    %v2366 = vpack.c.b16 %v2226, %v2222
    %v2367 = vpack.c.b16 %v2227, %v2223
    %v2368 = vpack.c.b16 %v2232, %v2228
    %v2369 = vpack.c.b16 %v2233, %v2229
    %v2370 = vpack.c.b16 %v2234, %v2230
    %v2371 = vpack.c.b16 %v2235, %v2231
    %v2372 = vpack.c.b16 %v2240, %v2236
    %v2373 = vpack.c.b16 %v2241, %v2237
    %v2374 = vpack.c.b16 %v2242, %v2238
    %v2375 = vpack.c.b16 %v2243, %v2239
    %v2376 = vpack.c.b16 %v2248, %v2244
    %v2377 = vpack.c.b16 %v2249, %v2245
    %v2378 = vpack.c.b16 %v2250, %v2246
    %v2379 = vpack.c.b16 %v2251, %v2247
    %2508 = vmatprep.subr.bf16.mxu0 %v2253
    %2509 = vmatpush1.bf16.msra.mxu0 %v2252
    %2510 = vmatprep.subr.bf16.mxu0 %v2257
    %2511 = vmatpush1.bf16.msra.mxu0 %v2256
    %2512 = vmatprep.subr.bf16.mxu0 %v2261
    %2513 = vmatpush1.bf16.msra.mxu0 %v2260
    %2514 = vmatprep.subr.bf16.mxu0 %v2265
    %2515 = vmatpush1.bf16.msra.mxu0 %v2264
    %2516 = vmatprep.subr.bf16.mxu0 %v2269
    %2517 = vmatpush1.bf16.msra.mxu0 %v2268
    %2518 = vmatprep.subr.bf16.mxu0 %v2273
    %2519 = vmatpush1.bf16.msra.mxu0 %v2272
    %2520 = vmatprep.subr.bf16.mxu0 %v2277
    %2521 = vmatpush1.bf16.msra.mxu0 %v2276
    %2522 = vmatprep.subr.bf16.mxu0 %v2281
    %2523 = vmatpush1.bf16.msra.mxu0 %v2280
    %2524 = vmatprep.subr.bf16.mxu0 %v2285
    %2525 = vmatpush1.bf16.msra.mxu0 %v2284
    %2526 = vmatprep.subr.bf16.mxu0 %v2289
    %2527 = vmatpush1.bf16.msra.mxu0 %v2288
    %2528 = vmatprep.subr.bf16.mxu0 %v2293
    %2529 = vmatpush1.bf16.msra.mxu0 %v2292
    %2530 = vmatprep.subr.bf16.mxu0 %v2297
    %2531 = vmatpush1.bf16.msra.mxu0 %v2296
    %2532 = vmatprep.subr.bf16.mxu0 %v2301
    %2533 = vmatpush1.bf16.msra.mxu0 %v2300
    %2534 = vmatprep.subr.bf16.mxu0 %v2305
    %2535 = vmatpush1.bf16.msra.mxu0 %v2304
    %2536 = vmatprep.subr.bf16.mxu0 %v2309
    %2537 = vmatpush1.bf16.msra.mxu0 %v2308
    %2538 = vmatprep.subr.bf16.mxu0 %v2313
    %2539 = vmatpush1.bf16.msra.mxu0 %v2312
    %2540 = vmatprep.mubr.bf16.mxu0 %v1715
    %2541 = vmatmul.mubr.bf16.gmra.mrb[0].mxu0 %v1714
    %v2542 = vpop.f32.mrb[0].mxu0
    %v2543 = vadd.f32 %v1851, %v2542
    %v2544 = vpop.f32.mrb[0].mxu0
    %v2545 = vadd.f32 %v1855, %v2544
    %v2546 = vpop.f32.mrb[0].mxu0
    %v2547 = vadd.f32 %v1851, %v2546
    %v2548 = vpop.f32.mrb[0].mxu0
    %v2549 = vadd.f32 %v1855, %v2548
    %2550 = vdwg.mxu0
    %2551 = vmatprep.subr.bf16.mxu0 %v2317
    %2552 = vmatpush1.bf16.msra.mxu0 %v2316
    %2553 = vmatprep.subr.bf16.mxu0 %v2321
    %2554 = vmatpush1.bf16.msra.mxu0 %v2320
    %2555 = vmatprep.subr.bf16.mxu0 %v2325
    %2556 = vmatpush1.bf16.msra.mxu0 %v2324
    %2557 = vmatprep.subr.bf16.mxu0 %v2329
    %2558 = vmatpush1.bf16.msra.mxu0 %v2328
    %2559 = vmatprep.subr.bf16.mxu0 %v2333
    %2560 = vmatpush1.bf16.msra.mxu0 %v2332
    %2561 = vmatprep.subr.bf16.mxu0 %v2337
    %2562 = vmatpush1.bf16.msra.mxu0 %v2336
    %2563 = vmatprep.subr.bf16.mxu0 %v2341
    %2564 = vmatpush1.bf16.msra.mxu0 %v2340
    %2565 = vmatprep.subr.bf16.mxu0 %v2345
    %2566 = vmatpush1.bf16.msra.mxu0 %v2344
    %2567 = vmatprep.subr.bf16.mxu0 %v2349
    %2568 = vmatpush1.bf16.msra.mxu0 %v2348
    %2569 = vmatprep.subr.bf16.mxu0 %v2353
    %2570 = vmatpush1.bf16.msra.mxu0 %v2352
    %2571 = vmatprep.subr.bf16.mxu0 %v2357
    %2572 = vmatpush1.bf16.msra.mxu0 %v2356
    %2573 = vmatprep.subr.bf16.mxu0 %v2361
    %2574 = vmatpush1.bf16.msra.mxu0 %v2360
    %2575 = vmatprep.subr.bf16.mxu0 %v2365
    %2576 = vmatpush1.bf16.msra.mxu0 %v2364
    %2577 = vmatprep.subr.bf16.mxu0 %v2369
    %2578 = vmatpush1.bf16.msra.mxu0 %v2368
    %2579 = vmatprep.subr.bf16.mxu0 %v2373
    %2580 = vmatpush1.bf16.msra.mxu0 %v2372
    %2581 = vmatprep.subr.bf16.mxu0 %v2377
    %2582 = vmatpush1.bf16.msra.mxu0 %v2376
    %2583 = vmatprep.mubr.bf16.mxu0 %v1717
    %2584 = vmatmul.mubr.bf16.gmra.mrb[0].mxu0 %v1716
    %v2585 = vpop.f32.mrb[0].mxu0
    %v2586 = vadd.f32 %v2543, %v2585
    %v2587 = vpop.f32.mrb[0].mxu0
    %v2588 = vadd.f32 %v2545, %v2587
    %v2589 = vpop.f32.mrb[0].mxu0
    %v2590 = vadd.f32 %v2547, %v2589
    %v2591 = vpop.f32.mrb[0].mxu0
    %v2592 = vadd.f32 %v2549, %v2591
    %2593 = vdwg.mxu0
    %2594 = vmatprep.subr.bf16.mxu0 %v2255
    %2595 = vmatpush1.bf16.msra.mxu0 %v2254
    %2596 = vmatprep.subr.bf16.mxu0 %v2259
    %2597 = vmatpush1.bf16.msra.mxu0 %v2258
    %2598 = vmatprep.subr.bf16.mxu0 %v2263
    %2599 = vmatpush1.bf16.msra.mxu0 %v2262
    %2600 = vmatprep.subr.bf16.mxu0 %v2267
    %2601 = vmatpush1.bf16.msra.mxu0 %v2266
    %2602 = vmatprep.subr.bf16.mxu0 %v2271
    %2603 = vmatpush1.bf16.msra.mxu0 %v2270
    %2604 = vmatprep.subr.bf16.mxu0 %v2275
    %2605 = vmatpush1.bf16.msra.mxu0 %v2274
    %2606 = vmatprep.subr.bf16.mxu0 %v2279
    %2607 = vmatpush1.bf16.msra.mxu0 %v2278
    %2608 = vmatprep.subr.bf16.mxu0 %v2283
    %2609 = vmatpush1.bf16.msra.mxu0 %v2282
    %2610 = vmatprep.subr.bf16.mxu0 %v2287
    %2611 = vmatpush1.bf16.msra.mxu0 %v2286
    %2612 = vmatprep.subr.bf16.mxu0 %v2291
    %2613 = vmatpush1.bf16.msra.mxu0 %v2290
    %2614 = vmatprep.subr.bf16.mxu0 %v2295
    %2615 = vmatpush1.bf16.msra.mxu0 %v2294
    %2616 = vmatprep.subr.bf16.mxu0 %v2299
    %2617 = vmatpush1.bf16.msra.mxu0 %v2298
    %2618 = vmatprep.subr.bf16.mxu0 %v2303
    %2619 = vmatpush1.bf16.msra.mxu0 %v2302
    %2620 = vmatprep.subr.bf16.mxu0 %v2307
    %2621 = vmatpush1.bf16.msra.mxu0 %v2306
    %2622 = vmatprep.subr.bf16.mxu0 %v2311
    %2623 = vmatpush1.bf16.msra.mxu0 %v2310
    %2624 = vmatprep.subr.bf16.mxu0 %v2315
    %2625 = vmatpush1.bf16.msra.mxu0 %v2314
    %2626 = vmatprep.mubr.bf16.mxu0 %v1715
    %2627 = vmatmul.mubr.bf16.gmra.mrb[0].mxu0 %v1714
    %v2628 = vpop.f32.mrb[0].mxu0
    %v2629 = vadd.f32 %v1859, %v2628
    %v2630 = vpop.f32.mrb[0].mxu0
    %v2631 = vadd.f32 %v1863, %v2630
    %v2632 = vpop.f32.mrb[0].mxu0
    %v2633 = vadd.f32 %v1859, %v2632
    %v2634 = vpop.f32.mrb[0].mxu0
    %v2635 = vadd.f32 %v1863, %v2634
    %2636 = vdwg.mxu0
    %2637 = vmatprep.subr.bf16.mxu0 %v2319
    %2638 = vmatpush1.bf16.msra.mxu0 %v2318
    %2639 = vmatprep.subr.bf16.mxu0 %v2323
    %2640 = vmatpush1.bf16.msra.mxu0 %v2322
    %2641 = vmatprep.subr.bf16.mxu0 %v2327
    %2642 = vmatpush1.bf16.msra.mxu0 %v2326
    %2643 = vmatprep.subr.bf16.mxu0 %v2331
    %2644 = vmatpush1.bf16.msra.mxu0 %v2330
    %2645 = vmatprep.subr.bf16.mxu0 %v2335
    %2646 = vmatpush1.bf16.msra.mxu0 %v2334
    %2647 = vmatprep.subr.bf16.mxu0 %v2339
    %2648 = vmatpush1.bf16.msra.mxu0 %v2338
    %2649 = vmatprep.subr.bf16.mxu0 %v2343
    %2650 = vmatpush1.bf16.msra.mxu0 %v2342
    %2651 = vmatprep.subr.bf16.mxu0 %v2347
    %2652 = vmatpush1.bf16.msra.mxu0 %v2346
    %2653 = vmatprep.subr.bf16.mxu0 %v2351
    %2654 = vmatpush1.bf16.msra.mxu0 %v2350
    %2655 = vmatprep.subr.bf16.mxu0 %v2355
    %2656 = vmatpush1.bf16.msra.mxu0 %v2354
    %2657 = vmatprep.subr.bf16.mxu0 %v2359
    %2658 = vmatpush1.bf16.msra.mxu0 %v2358
    %2659 = vmatprep.subr.bf16.mxu0 %v2363
    %2660 = vmatpush1.bf16.msra.mxu0 %v2362
    %2661 = vmatprep.subr.bf16.mxu0 %v2367
    %2662 = vmatpush1.bf16.msra.mxu0 %v2366
    %2663 = vmatprep.subr.bf16.mxu0 %v2371
    %2664 = vmatpush1.bf16.msra.mxu0 %v2370
    %2665 = vmatprep.subr.bf16.mxu0 %v2375
    %2666 = vmatpush1.bf16.msra.mxu0 %v2374
    %2667 = vmatprep.subr.bf16.mxu0 %v2379
    %2668 = vmatpush1.bf16.msra.mxu0 %v2378
    %2669 = vmatprep.mubr.bf16.mxu0 %v1717
    %2670 = vmatmul.mubr.bf16.gmra.mrb[0].mxu0 %v1716
    %v2671 = vpop.f32.mrb[0].mxu0
    %v2672 = vadd.f32 %v2629, %v2671
    %v2673 = vpop.f32.mrb[0].mxu0
    %v2674 = vadd.f32 %v2631, %v2673
    %v2675 = vpop.f32.mrb[0].mxu0
    %v2676 = vadd.f32 %v2633, %v2675
    %v2677 = vpop.f32.mrb[0].mxu0
    %v2678 = vadd.f32 %v2635, %v2677
    %2679 = vdwg.mxu0
    %v2680 = vmax.f32 %v2586, 0.0
    %v2681 = vmax.f32 %v2588, 0.0
    %v2682 = vmax.f32 %v2672, 0.0
    %v2683 = vmax.f32 %v2674, 0.0
    %v2684 = vmax.f32 %v2590, 0.0
    %v2685 = vmax.f32 %v2592, 0.0
    %v2686 = vmax.f32 %v2676, 0.0
    %v2687 = vmax.f32 %v2678, 0.0
    %v2688 = vpack.c.bf16 %v2684, %v2680
    %v2689 = vpack.c.bf16 %v2685, %v2681
    %v2690 = vpack.c.bf16 %v2686, %v2682
    %v2691 = vpack.c.bf16 %v2687, %v2683
    %v2692 = vld [vmem:[#allocation11] sm:$0xf]
    %v2693 = vld [vmem:[#allocation11 + $0x4] sm:$0xf]
    %v2694 = vld [vmem:[#allocation11 + $0x8] sm:$0xf]
    %v2695 = vld [vmem:[#allocation11 + $0xc] sm:$0xf]
    %v2696 = vld [vmem:[#allocation11 + $0x10] sm:$0xf]
    %v2697 = vld [vmem:[#allocation11 + $0x14] sm:$0xf]
    %v2698 = vld [vmem:[#allocation11 + $0x18] sm:$0xf]
    %v2699 = vld [vmem:[#allocation11 + $0x1c] sm:$0xf]
    %v2700 = vld [vmem:[#allocation11 + $0x20] sm:$0xf]
    %v2701 = vld [vmem:[#allocation11 + $0x24] sm:$0xf]
    %v2702 = vld [vmem:[#allocation11 + $0x28] sm:$0xf]
    %v2703 = vld [vmem:[#allocation11 + $0x2c] sm:$0xf]
    %v2704 = vld [vmem:[#allocation11 + $0x30] sm:$0xf]
    %v2705 = vld [vmem:[#allocation11 + $0x34] sm:$0xf]
    %v2706 = vld [vmem:[#allocation11 + $0x38] sm:$0xf]
    %v2707 = vld [vmem:[#allocation11 + $0x3c] sm:$0xf]
    %v2708 = vld [vmem:[#allocation11 + $0x40] sm:$0xf]
    %v2709 = vld [vmem:[#allocation11 + $0x44] sm:$0xf]
    %v2710 = vld [vmem:[#allocation11 + $0x48] sm:$0xf]
    %v2711 = vld [vmem:[#allocation11 + $0x4c] sm:$0xf]
    %v2712 = vld [vmem:[#allocation11 + $0x50] sm:$0xf]
    %v2713 = vld [vmem:[#allocation11 + $0x54] sm:$0xf]
    %v2714 = vld [vmem:[#allocation11 + $0x58] sm:$0xf]
    %v2715 = vld [vmem:[#allocation11 + $0x5c] sm:$0xf]
    %v2716 = vld [vmem:[#allocation11 + $0x60] sm:$0xf]
    %v2717 = vld [vmem:[#allocation11 + $0x64] sm:$0xf]
    %v2718 = vld [vmem:[#allocation11 + $0x68] sm:$0xf]
    %v2719 = vld [vmem:[#allocation11 + $0x6c] sm:$0xf]
    %v2720 = vld [vmem:[#allocation11 + $0x70] sm:$0xf]
    %v2721 = vld [vmem:[#allocation11 + $0x74] sm:$0xf]
    %v2722 = vld [vmem:[#allocation11 + $0x78] sm:$0xf]
    %v2723 = vld [vmem:[#allocation11 + $0x7c] sm:$0xf]
    %v2724 = vld [vmem:[#allocation11 + $0x80] sm:$0xf]
    %v2725 = vld [vmem:[#allocation11 + $0x84] sm:$0xf]
    %v2726 = vld [vmem:[#allocation11 + $0x88] sm:$0xf]
    %v2727 = vld [vmem:[#allocation11 + $0x8c] sm:$0xf]
    %v2728 = vld [vmem:[#allocation11 + $0x90] sm:$0xf]
    %v2729 = vld [vmem:[#allocation11 + $0x94] sm:$0xf]
    %v2730 = vld [vmem:[#allocation11 + $0x98] sm:$0xf]
    %v2731 = vld [vmem:[#allocation11 + $0x9c] sm:$0xf]
    %v2732 = vld [vmem:[#allocation11 + $0xa0] sm:$0xf]
    %v2733 = vld [vmem:[#allocation11 + $0xa4] sm:$0xf]
    %v2734 = vld [vmem:[#allocation11 + $0xa8] sm:$0xf]
    %v2735 = vld [vmem:[#allocation11 + $0xac] sm:$0xf]
    %v2736 = vld [vmem:[#allocation11 + $0xb0] sm:$0xf]
    %v2737 = vld [vmem:[#allocation11 + $0xb4] sm:$0xf]
    %v2738 = vld [vmem:[#allocation11 + $0xb8] sm:$0xf]
    %v2739 = vld [vmem:[#allocation11 + $0xbc] sm:$0xf]
    %v2740 = vld [vmem:[#allocation11 + $0xc0] sm:$0xf]
    %v2741 = vld [vmem:[#allocation11 + $0xc4] sm:$0xf]
    %v2742 = vld [vmem:[#allocation11 + $0xc8] sm:$0xf]
    %v2743 = vld [vmem:[#allocation11 + $0xcc] sm:$0xf]
    %v2744 = vld [vmem:[#allocation11 + $0xd0] sm:$0xf]
    %v2745 = vld [vmem:[#allocation11 + $0xd4] sm:$0xf]
    %v2746 = vld [vmem:[#allocation11 + $0xd8] sm:$0xf]
    %v2747 = vld [vmem:[#allocation11 + $0xdc] sm:$0xf]
    %v2748 = vld [vmem:[#allocation11 + $0xe0] sm:$0xf]
    %v2749 = vld [vmem:[#allocation11 + $0xe4] sm:$0xf]
    %v2750 = vld [vmem:[#allocation11 + $0xe8] sm:$0xf]
    %v2751 = vld [vmem:[#allocation11 + $0xec] sm:$0xf]
    %v2752 = vld [vmem:[#allocation11 + $0xf0] sm:$0xf]
    %v2753 = vld [vmem:[#allocation11 + $0xf4] sm:$0xf]
    %v2754 = vld [vmem:[#allocation11 + $0xf8] sm:$0xf]
    %v2755 = vld [vmem:[#allocation11 + $0xfc] sm:$0xf]
    %v2756 = vld [vmem:[#allocation13] sm:$0x1]
    %v2758 = vlaneseq
    %v2759 = vshrl.u32 %v2758, 7
    %v2760 = vsub.s32 0, %v2759
    %v2761 = vrot.slane %v2756, %v2760
    %v2827 = vunpack.c.l.b16 %v2692
    %v2828 = vunpack.c.l.b16 %v2693
    %v2829 = vunpack.c.l.b16 %v2694
    %v2830 = vunpack.c.l.b16 %v2695
    %v2831 = vunpack.c.l.b16 %v2696
    %v2832 = vunpack.c.l.b16 %v2697
    %v2833 = vunpack.c.l.b16 %v2698
    %v2834 = vunpack.c.l.b16 %v2699
    %v2835 = vunpack.c.l.b16 %v2700
    %v2836 = vunpack.c.l.b16 %v2701
    %v2837 = vunpack.c.l.b16 %v2702
    %v2838 = vunpack.c.l.b16 %v2703
    %v2839 = vunpack.c.l.b16 %v2704
    %v2840 = vunpack.c.l.b16 %v2705
    %v2841 = vunpack.c.l.b16 %v2706
    %v2842 = vunpack.c.l.b16 %v2707
    %v2843 = vunpack.c.l.b16 %v2708
    %v2844 = vunpack.c.l.b16 %v2709
    %v2845 = vunpack.c.l.b16 %v2710
    %v2846 = vunpack.c.l.b16 %v2711
    %v2847 = vunpack.c.l.b16 %v2712
    %v2848 = vunpack.c.l.b16 %v2713
    %v2849 = vunpack.c.l.b16 %v2714
    %v2850 = vunpack.c.l.b16 %v2715
    %v2851 = vunpack.c.l.b16 %v2716
    %v2852 = vunpack.c.l.b16 %v2717
    %v2853 = vunpack.c.l.b16 %v2718
    %v2854 = vunpack.c.l.b16 %v2719
    %v2855 = vunpack.c.l.b16 %v2720
    %v2856 = vunpack.c.l.b16 %v2721
    %v2857 = vunpack.c.l.b16 %v2722
    %v2858 = vunpack.c.l.b16 %v2723
    %v2859 = vunpack.c.l.b16 %v2724
    %v2860 = vunpack.c.l.b16 %v2725
    %v2861 = vunpack.c.l.b16 %v2726
    %v2862 = vunpack.c.l.b16 %v2727
    %v2863 = vunpack.c.l.b16 %v2728
    %v2864 = vunpack.c.l.b16 %v2729
    %v2865 = vunpack.c.l.b16 %v2730
    %v2866 = vunpack.c.l.b16 %v2731
    %v2867 = vunpack.c.l.b16 %v2732
    %v2868 = vunpack.c.l.b16 %v2733
    %v2869 = vunpack.c.l.b16 %v2734
    %v2870 = vunpack.c.l.b16 %v2735
    %v2871 = vunpack.c.l.b16 %v2736
    %v2872 = vunpack.c.l.b16 %v2737
    %v2873 = vunpack.c.l.b16 %v2738
    %v2874 = vunpack.c.l.b16 %v2739
    %v2875 = vunpack.c.l.b16 %v2740
    %v2876 = vunpack.c.l.b16 %v2741
    %v2877 = vunpack.c.l.b16 %v2742
    %v2878 = vunpack.c.l.b16 %v2743
    %v2879 = vunpack.c.l.b16 %v2744
    %v2880 = vunpack.c.l.b16 %v2745
    %v2881 = vunpack.c.l.b16 %v2746
    %v2882 = vunpack.c.l.b16 %v2747
    %v2883 = vunpack.c.l.b16 %v2748
    %v2884 = vunpack.c.l.b16 %v2749
    %v2885 = vunpack.c.l.b16 %v2750
    %v2886 = vunpack.c.l.b16 %v2751
    %v2887 = vunpack.c.l.b16 %v2752
    %v2888 = vunpack.c.l.b16 %v2753
    %v2889 = vunpack.c.l.b16 %v2754
    %v2890 = vunpack.c.l.b16 %v2755
    %v2891 = vpack.c.b16 %v2828, %v2827
    %v2892 = vpack.c.b16 %v2830, %v2829
    %v2893 = vpack.c.b16 %v2832, %v2831
    %v2894 = vpack.c.b16 %v2834, %v2833
    %v2895 = vpack.c.b16 %v2836, %v2835
    %v2896 = vpack.c.b16 %v2838, %v2837
    %v2897 = vpack.c.b16 %v2840, %v2839
    %v2898 = vpack.c.b16 %v2842, %v2841
    %v2899 = vpack.c.b16 %v2844, %v2843
    %v2900 = vpack.c.b16 %v2846, %v2845
    %v2901 = vpack.c.b16 %v2848, %v2847
    %v2902 = vpack.c.b16 %v2850, %v2849
    %v2903 = vpack.c.b16 %v2852, %v2851
    %v2904 = vpack.c.b16 %v2854, %v2853
    %v2905 = vpack.c.b16 %v2856, %v2855
    %v2906 = vpack.c.b16 %v2858, %v2857
    %v2907 = vpack.c.b16 %v2860, %v2859
    %v2908 = vpack.c.b16 %v2862, %v2861
    %v2909 = vpack.c.b16 %v2864, %v2863
    %v2910 = vpack.c.b16 %v2866, %v2865
    %v2911 = vpack.c.b16 %v2868, %v2867
    %v2912 = vpack.c.b16 %v2870, %v2869
    %v2913 = vpack.c.b16 %v2872, %v2871
    %v2914 = vpack.c.b16 %v2874, %v2873
    %v2915 = vpack.c.b16 %v2876, %v2875
    %v2916 = vpack.c.b16 %v2878, %v2877
    %v2917 = vpack.c.b16 %v2880, %v2879
    %v2918 = vpack.c.b16 %v2882, %v2881
    %v2919 = vpack.c.b16 %v2884, %v2883
    %v2920 = vpack.c.b16 %v2886, %v2885
    %v2921 = vpack.c.b16 %v2888, %v2887
    %v2922 = vpack.c.b16 %v2890, %v2889
    %2955 = vmatprep.subr.bf16.mxu0 0
    %2956 = vmatpush1.bf16.msra.mxu0 %v2891
    %2957 = vmatprep.subr.bf16.mxu0 0
    %2958 = vmatpush1.bf16.msra.mxu0 %v2892
    %2959 = vmatprep.subr.bf16.mxu0 0
    %2960 = vmatpush1.bf16.msra.mxu0 %v2893
    %2961 = vmatprep.subr.bf16.mxu0 0
    %2962 = vmatpush1.bf16.msra.mxu0 %v2894
    %2963 = vmatprep.subr.bf16.mxu0 0
    %2964 = vmatpush1.bf16.msra.mxu0 %v2895
    %2965 = vmatprep.subr.bf16.mxu0 0
    %2966 = vmatpush1.bf16.msra.mxu0 %v2896
    %2967 = vmatprep.subr.bf16.mxu0 0
    %2968 = vmatpush1.bf16.msra.mxu0 %v2897
    %2969 = vmatprep.subr.bf16.mxu0 0
    %2970 = vmatpush1.bf16.msra.mxu0 %v2898
    %2971 = vmatprep.subr.bf16.mxu0 0
    %2972 = vmatpush1.bf16.msra.mxu0 %v2899
    %2973 = vmatprep.subr.bf16.mxu0 0
    %2974 = vmatpush1.bf16.msra.mxu0 %v2900
    %2975 = vmatprep.subr.bf16.mxu0 0
    %2976 = vmatpush1.bf16.msra.mxu0 %v2901
    %2977 = vmatprep.subr.bf16.mxu0 0
    %2978 = vmatpush1.bf16.msra.mxu0 %v2902
    %2979 = vmatprep.subr.bf16.mxu0 0
    %2980 = vmatpush1.bf16.msra.mxu0 %v2903
    %2981 = vmatprep.subr.bf16.mxu0 0
    %2982 = vmatpush1.bf16.msra.mxu0 %v2904
    %2983 = vmatprep.subr.bf16.mxu0 0
    %2984 = vmatpush1.bf16.msra.mxu0 %v2905
    %2985 = vmatprep.subr.bf16.mxu0 0
    %2986 = vmatpush1.bf16.msra.mxu0 %v2906
    %2987 = vmatprep.mubr.bf16.mxu0 %v2689
    %2988 = vmatmul.mubr.bf16.gmra.mrb[0].mxu0 %v2688
    %v2989 = vpop.f32.mrb[0].mxu0
    %v2990 = vadd.f32 %v2761, %v2989
    %v2991 = vpop.f32.mrb[0].mxu0
    %v2992 = vpop.f32.mrb[0].mxu0
    %v2993 = vadd.f32 %v2761, %v2992
    %v2994 = vpop.f32.mrb[0].mxu0
    %2995 = vdwg.mxu0
    %2996 = vmatprep.subr.bf16.mxu0 0
    %2997 = vmatpush1.bf16.msra.mxu0 %v2907
    %2998 = vmatprep.subr.bf16.mxu0 0
    %2999 = vmatpush1.bf16.msra.mxu0 %v2908
    %3000 = vmatprep.subr.bf16.mxu0 0
    %3001 = vmatpush1.bf16.msra.mxu0 %v2909
    %3002 = vmatprep.subr.bf16.mxu0 0
    %3003 = vmatpush1.bf16.msra.mxu0 %v2910
    %3004 = vmatprep.subr.bf16.mxu0 0
    %3005 = vmatpush1.bf16.msra.mxu0 %v2911
    %3006 = vmatprep.subr.bf16.mxu0 0
    %3007 = vmatpush1.bf16.msra.mxu0 %v2912
    %3008 = vmatprep.subr.bf16.mxu0 0
    %3009 = vmatpush1.bf16.msra.mxu0 %v2913
    %3010 = vmatprep.subr.bf16.mxu0 0
    %3011 = vmatpush1.bf16.msra.mxu0 %v2914
    %3012 = vmatprep.subr.bf16.mxu0 0
    %3013 = vmatpush1.bf16.msra.mxu0 %v2915
    %3014 = vmatprep.subr.bf16.mxu0 0
    %3015 = vmatpush1.bf16.msra.mxu0 %v2916
    %3016 = vmatprep.subr.bf16.mxu0 0
    %3017 = vmatpush1.bf16.msra.mxu0 %v2917
    %3018 = vmatprep.subr.bf16.mxu0 0
    %3019 = vmatpush1.bf16.msra.mxu0 %v2918
    %3020 = vmatprep.subr.bf16.mxu0 0
    %3021 = vmatpush1.bf16.msra.mxu0 %v2919
    %3022 = vmatprep.subr.bf16.mxu0 0
    %3023 = vmatpush1.bf16.msra.mxu0 %v2920
    %3024 = vmatprep.subr.bf16.mxu0 0
    %3025 = vmatpush1.bf16.msra.mxu0 %v2921
    %3026 = vmatprep.subr.bf16.mxu0 0
    %3027 = vmatpush1.bf16.msra.mxu0 %v2922
    %3028 = vmatprep.mubr.bf16.mxu0 %v2691
    %3029 = vmatmul.mubr.bf16.gmra.mrb[0].mxu0 %v2690
    %v3030 = vpop.f32.mrb[0].mxu0
    %v3031 = vadd.f32 %v2990, %v3030
    %v3032 = vpop.f32.mrb[0].mxu0
    %v3033 = vpop.f32.mrb[0].mxu0
    %v3034 = vadd.f32 %v2993, %v3033
    %v3035 = vpop.f32.mrb[0].mxu0
    %3036 = vdwg.mxu0
    %3037 = vst [vmem:[#allocation14] sm:$0xff] %v3031
    %3038 = vst [vmem:[#allocation14 + $0x8] sm:$0xff] %v3034
    // Predicated region
    $region58: #{neural_network_forward.1} parent=1 // pred_check
      _
    $region59: #{neural_network_forward.1} parent=1 // pred_check_branch
      %3040 = sbr.rel (0) target = $region61
    $region60: #{neural_network_forward.1} parent=1 // pred_region
      %s3042 = ssub.s32 256, 256
      %3043 = vsyncadd [#allocation4], %s3042
      %s3044 = sshll.u32 [#allocation14], 4
      %s3045 = int_to_ptr.vmem [resolvable:$true] %s3044
      %3050 = dma.vmem_to_hbm [thread:$0]  %s3045, 256, %s7, [#allocation4], 128, 128, 8
    $region61: #{neural_network_forward.1} parent=1 // pred_fallthru
      _
    // Predicated region
    $region62: #{neural_network_forward.1} parent=1 // pred_check
      _
    $region63: #{neural_network_forward.1} parent=1 // pred_check_branch
      %3052 = sbr.rel (0) target = $region65
    $region64: #{neural_network_forward.1} parent=1 // pred_region
      %3053 = dma.done [#allocation4], 256
    $region65: #{neural_network_forward.1} parent=1 // pred_fallthru
      _
    %3054 = vsyncpa [#allocation3], 1
    %3055 = vsyncpa [#allocation6], 1
    %3056 = vsyncpa [#allocation9], 1
    %3057 = vsyncpa [#allocation12], 1
    %3058 = vsyncpa [#allocation4], 1

</llo_original>
